<compile_context>
chip_gen: v5e
topology: v5e:2x2
jax: 0.10.0
libtpu: 0.0.40
codegen_flags: <defaults>
</compile_context>

<pallas_src>
import math
from functools import partial

import jax
import jax.numpy as jnp
from jax.experimental import pallas as pl
from jax.experimental.pallas import tpu as pltpu

MXU_DTYPE = jnp.bfloat16           # MXU matmul input dtype (f32 accumulation)


def _vmem_limit_bytes():
    """Generation-aware scoped-VMEM budget: ~3/4 of physical VMEM
    (~96 MiB on v5e/v6e, ~48 MiB on v7x); safe 32 MiB fallback."""
    try:
        info = pltpu.get_tpu_info()
        cap = getattr(info, "vmem_capacity_bytes", None)
        if cap:
            return int(min((cap * 3) // 4, 112 * 1024 * 1024))
    except Exception:
        pass
    return 32 * 1024 * 1024


_VMEM_LIMIT = _vmem_limit_bytes()


# ----------------------------------------------------------------------------
# Small helpers (used inside kernels)
# ----------------------------------------------------------------------------
def _sigmoid(v):
    return 1.0 / (1.0 + jnp.exp(-v))


def _silu(v):
    return v * _sigmoid(v)


def _softplus(v):
    # matches torch.nn.functional.softplus with threshold=20
    return jnp.where(v > 20.0, v, jnp.log(1.0 + jnp.exp(jnp.minimum(v, 20.0))))


def _pick_tile(dim, cap, units):
    """Largest multiple of a preferred unit (<= cap) dividing `dim`; else full dim."""
    for unit in units:
        t = min(cap, dim)
        t -= t % unit
        while t >= unit:
            if dim % t == 0:
                return t
            t -= unit
    return dim


# ----------------------------------------------------------------------------
# Tiled matmul kernel: (M, K) @ (K, N) -> (M, N), f32 accumulator in scratch,
# K-axis accumulation with pl.when init/finalize, bf16 MXU inputs (caller casts).
# ----------------------------------------------------------------------------
def _matmul_kernel(x_ref, w_ref, o_ref, acc_ref):
    @pl.when(pl.program_id(2) == 0)
    def _():
        acc_ref[...] = jnp.zeros_like(acc_ref)

    acc_ref[...] += jnp.dot(
        x_ref[...], w_ref[...], preferred_element_type=jnp.float32
    )

    @pl.when(pl.program_id(2) == pl.num_programs(2) - 1)
    def _():
        o_ref[...] = acc_ref[...].astype(o_ref.dtype)


def matmul(x, w, *, tm_cap=512, tn_cap=512, tk_cap=1024):
    M, K = x.shape
    K2, N = w.shape
    assert K == K2
    tm = _pick_tile(M, tm_cap, (8,))
    # 256-aligned N/K tiles feed the v6e/v7x 2x256x256 MXU full width
    # (128-multiples remain ideal on v5e and are the fallback).
    tn = _pick_tile(N, tn_cap, (256, 128))
    tk = _pick_tile(K, tk_cap, (256, 128))
    grid = (M // tm, N // tn, K // tk)
    return pl.pallas_call(
        _matmul_kernel,
        out_shape=jax.ShapeDtypeStruct((M, N), jnp.float32),
        grid=grid,
        in_specs=[
            pl.BlockSpec((tm, tk), lambda i, j, k: (i, k)),
            pl.BlockSpec((tk, tn), lambda i, j, k: (k, j)),
        ],
        out_specs=pl.BlockSpec((tm, tn), lambda i, j, k: (i, j)),
        scratch_shapes=[pltpu.VMEM((tm, tn), jnp.float32)],
        compiler_params=pltpu.CompilerParams(
            dimension_semantics=("parallel", "parallel", "arbitrary"),
            vmem_limit_bytes=_VMEM_LIMIT,
        ),
    )(x, w)


# ----------------------------------------------------------------------------
# Row-tiled RMSNorm kernel: x (M, D), weight (1, D); f32 math, bf16 output
# so the LM head reads/writes half the HBM bytes.
# ----------------------------------------------------------------------------
def _rmsnorm_kernel(x_ref, w_ref, o_ref, *, eps):
    x = x_ref[...].astype(jnp.float32)
    var = jnp.mean(x * x, axis=-1, keepdims=True)
    o_ref[...] = (x * jax.lax.rsqrt(var + eps) * w_ref[...]).astype(o_ref.dtype)


def rmsnorm(x, w, eps=1e-5, row_cap=1024, out_dtype=MXU_DTYPE):
    M, D = x.shape
    tm = _pick_tile(M, row_cap, (8,))
    return pl.pallas_call(
        partial(_rmsnorm_kernel, eps=eps),
        out_shape=jax.ShapeDtypeStruct((M, D), out_dtype),
        grid=(M // tm,),
        in_specs=[
            pl.BlockSpec((tm, D), lambda i: (i, 0)),
            pl.BlockSpec((1, D), lambda i: (0, 0)),
        ],
        out_specs=pl.BlockSpec((tm, D), lambda i: (i, 0)),
        compiler_params=pltpu.CompilerParams(
            dimension_semantics=("parallel",),
            vmem_limit_bytes=_VMEM_LIMIT,
        ),
    )(x, w.reshape(1, D))


# ----------------------------------------------------------------------------
# Fused Mamba backbone kernel: grid = (batch, layer), residual stream carried
# in VMEM scratch across the (sequential, "arbitrary") layer axis.
# ----------------------------------------------------------------------------
def _mamba_layers_kernel(
    # inputs
    h_ref, normw_ref, inproj_ref, convw_ref, convb_ref, xproj_ref,
    dtw_ref, dtb_ref, A_ref, D_ref, outproj_ref,
    # outputs
    o_ref,
    # scratch
    h_res, xc_scr, dt_scr, bm_scr, cm_scr, y_scr, dA_scr,
    *, L, d_inner, d_state, d_conv, dt_rank, eps, w_chunk, t_blk,
):
    layer = pl.program_id(1)

    # ---- load the residual stream (embedding output) once per batch block ----
    @pl.when(layer == 0)
    def _():
        h_res[...] = h_ref[0].astype(jnp.float32)

    h = h_res[...]                                     # (L, d_model) f32

    # ---- RMSNorm ----
    var = jnp.mean(h * h, axis=-1, keepdims=True)
    xn = h * jax.lax.rsqrt(var + eps) * normw_ref[0]

    # ---- in_proj -> (x | z) ----
    xz = jnp.dot(xn.astype(MXU_DTYPE), inproj_ref[0],
                 preferred_element_type=jnp.float32)   # (L, 2*d_inner)
    x = xz[:, :d_inner]
    z = xz[:, d_inner:]

    # ---- causal depthwise conv (time on sublanes, channels on lanes) ----
    cw = convw_ref[0]                                  # (d_conv, d_inner)
    row_idx = jax.lax.broadcasted_iota(jnp.int32, (L, 1), 0)   # (L,1) mask source
    conv = x * cw[d_conv - 1:d_conv, :]                # tap with shift == 0
    for k in range(d_conv - 1):
        shift = d_conv - 1 - k                         # tap k reads x[t - shift]
        xs = pltpu.roll(x, shift, axis=0)
        xs = jnp.where(row_idx >= shift, xs, 0.0)      # (L,1) cond, no full iota
        conv = conv + xs * cw[k:k + 1, :]
    xc = _silu(conv + convb_ref[0])                    # (L, d_inner)
    xc_scr[...] = xc

    # ---- fused x_proj: one MXU push -> (dt_in | B | C) ----
    xp = jnp.dot(xc.astype(MXU_DTYPE), xproj_ref[0],
                 preferred_element_type=jnp.float32)   # (L, dt_rank + 2*d_state)
    dt_in = xp[:, :dt_rank]
    bm_scr[...] = xp[:, dt_rank:dt_rank + d_state]     # (L, d_state)
    cm_scr[...] = xp[:, dt_rank + d_state:]            # (L, d_state)

    # ---- dt_proj (bf16 MXU inputs) + softplus in f32 ----
    dt = jnp.dot(dt_in.astype(MXU_DTYPE), dtw_ref[0],
                 preferred_element_type=jnp.float32)
    dt_scr[...] = _softplus(dt + dtb_ref[0])           # (L, d_inner)

    A = A_ref[0]                                       # (d_state, d_inner) = (-exp(A_log)).T
    n_wchunks = d_inner // w_chunk
    n_tblocks = L // t_blk
    pre_unroll = True if L <= 32 else 8

    # ---- selective scan, chunked over d_inner: carried state stays small ----
    for c in range(n_wchunks):
        col0 = c * w_chunk
        A_c = A[:, col0:col0 + w_chunk]                # (d_state, w_chunk)

        # precompute dA_t = exp(dt_t * A) for this chunk: keeps the EUP exp off
        # the serial recurrence chain; only ONE (L, d_state, w_chunk) buffer
        # (u = B (x) dt*x is formed on the fly in the scan, never stored).
        def precompute(t, carry):
            dt_row = dt_scr[pl.ds(t, 1), pl.ds(col0, w_chunk)]   # (1, w_chunk)
            dA_scr[t] = jnp.exp(dt_row * A_c)                    # (d_state, w_chunk)
            return carry

        jax.lax.fori_loop(0, L, precompute, 0, unroll=pre_unroll)

        # sequential recurrence: pure VPU fma on the carried chain.  B/C are
        # transposed once per time block (not per step) and y_t uses a VPU
        # broadcast-multiply + sublane reduce instead of a 1x16 MXU dot.
        def scan_tblock(tb, hstate):
            t0 = pl.multiple_of(tb * t_blk, t_blk)
            bT = jnp.transpose(bm_scr[pl.ds(t0, t_blk), :])      # (d_state, t_blk)
            cT = jnp.transpose(cm_scr[pl.ds(t0, t_blk), :])      # (d_state, t_blk)
            dtx_blk = (dt_scr[pl.ds(t0, t_blk), pl.ds(col0, w_chunk)]
                       * xc_scr[pl.ds(t0, t_blk), pl.ds(col0, w_chunk)])
            for j in range(t_blk):
                u_t = bT[:, j:j + 1] * dtx_blk[j:j + 1, :]       # (d_state, w_chunk)
                hstate = dA_scr[t0 + j] * hstate + u_t
                y_scr[pl.ds(t0 + j, 1), pl.ds(col0, w_chunk)] = jnp.sum(
                    cT[:, j:j + 1] * hstate, axis=0, keepdims=True)
            return hstate

        h0 = jnp.zeros((d_state, w_chunk), jnp.float32)
        jax.lax.fori_loop(0, n_tblocks, scan_tblock, h0)

    # ---- D skip + SiLU(z) gating + out_proj + residual ----
    y = (y_scr[...] + D_ref[0] * xc) * _silu(z)        # (L, d_inner)
    out = jnp.dot(y.astype(MXU_DTYPE), outproj_ref[0],
                  preferred_element_type=jnp.float32)  # (L, d_model)
    h_res[...] = h + out

    @pl.when(layer == pl.num_programs(1) - 1)
    def _():
        o_ref[0] = h_res[...].astype(o_ref.dtype)


def mamba_backbone(h, params, eps):
    B, L, d_model = h.shape
    num_layers, d_conv, d_inner = params["conv_w"].shape
    d_state = params["A_T"].shape[1]
    dt_rank = params["dt_proj_w"].shape[1]

    w_chunk = _pick_tile(d_inner, 512, (128,))   # d_inner chunk for the scan
    t_blk = math.gcd(L, 8)                       # time block for B/C column reuse

    def wspec(arr):
        return pl.BlockSpec((1,) + arr.shape[1:], lambda b, l: (l, 0, 0))

    io_spec = pl.BlockSpec((1, L, d_model), lambda b, l: (b, 0, 0))

    kernel = partial(
        _mamba_layers_kernel,
        L=L, d_inner=d_inner, d_state=d_state, d_conv=d_conv,
        dt_rank=dt_rank, eps=eps, w_chunk=w_chunk, t_blk=t_blk,
    )
    # NOTE: the layer axis MUST stay innermost + "arbitrary" (residual carry).
    return pl.pallas_call(
        kernel,
        out_shape=jax.ShapeDtypeStruct((B, L, d_model), MXU_DTYPE),
        grid=(B, num_layers),
        in_specs=[
            io_spec,                                   # h (embedding output)
            wspec(params["norm_w"]),
            wspec(params["in_proj_w"]),
            wspec(params["conv_w"]),
            wspec(params["conv_b"]),
            wspec(params["x_proj_w"]),
            wspec(params["dt_proj_w"]),
            wspec(params["dt_proj_b"]),
            wspec(params["A_T"]),
            wspec(params["D"]),
            wspec(params["out_proj_w"]),
        ],
        out_specs=io_spec,
        scratch_shapes=[
            pltpu.VMEM((L, d_model), jnp.float32),            # residual stream
            pltpu.VMEM((L, d_inner), jnp.float32),            # conv output xc
            pltpu.VMEM((L, d_inner), jnp.float32),            # dt (post softplus)
            pltpu.VMEM((L, d_state), jnp.float32),            # B
            pltpu.VMEM((L, d_state), jnp.float32),            # C
            pltpu.VMEM((L, d_inner), jnp.float32),            # y rows
            pltpu.VMEM((L, d_state, w_chunk), jnp.float32),   # exp(dt*A), one chunk
        ],
        compiler_params=pltpu.CompilerParams(
            dimension_semantics=("parallel", "arbitrary"),
            vmem_limit_bytes=_VMEM_LIMIT,
        ),
    )(
        h,
        params["norm_w"], params["in_proj_w"], params["conv_w"], params["conv_b"],
        params["x_proj_w"], params["dt_proj_w"], params["dt_proj_b"],
        params["A_T"], params["D"], params["out_proj_w"],
    )


# ----------------------------------------------------------------------------
# Model glue (plain JAX): embedding gather, reshapes
# ----------------------------------------------------------------------------
def mambabyte_lm_forward(input_ids, params, norm_eps=1e-5):
    B, L = input_ids.shape
    # TODO(synk): embedding gather kept in plain JAX (no rectangular-tile DMA pattern).
    h = jnp.take(params["embedding"], input_ids, axis=0)       # (B, L, d_model)
    h = mamba_backbone(h, params, norm_eps)                    # all layers, one pallas_call
    d_model = h.shape[-1]
    h2 = rmsnorm(h.reshape(B * L, d_model), params["norm_f_w"], eps=norm_eps)
    logits = matmul(h2, params["lm_head_w"]).reshape(B, L, -1)
    return logits


# ----------------------------------------------------------------------------
# Deterministic parameter init (per-layer weights stacked on a leading axis)
# ----------------------------------------------------------------------------
def init_params(key, vocab, d_model, num_layers, d_state, d_conv, expand):
    d_inner = expand * d_model
    dt_rank = math.ceil(d_model / 16)
    keys = jax.random.split(key, 8)

    def nrm(k, shape, scale, dtype=jnp.float32):
        return (scale * jax.random.normal(k, shape, dtype=jnp.float32)).astype(dtype)

    A_log = jnp.log(jnp.tile(
        jnp.arange(1, d_state + 1, dtype=jnp.float32)[None, :], (d_inner, 1)))
    A_T = (-jnp.exp(A_log)).T                                   # (d_state, d_inner)

    params = {
        "embedding": nrm(keys[0], (vocab, d_model), 0.02),
        "lm_head_w": nrm(keys[1], (d_model, vocab), 0.02, MXU_DTYPE),
        "norm_f_w": jnp.ones((d_model,), jnp.float32),
        "norm_w": jnp.ones((num_layers, 1, d_model), jnp.float32),
        "in_proj_w": nrm(keys[2], (num_layers, d_model, 2 * d_inner),
                         1.0 / math.sqrt(d_model), MXU_DTYPE),
        "conv_w": nrm(keys[3], (num_layers, d_conv, d_inner), 1.0 / math.sqrt(d_conv)),
        "conv_b": nrm(keys[4], (num_layers, 1, d_inner), 0.1),
        # fused x_proj weight: columns = [dt_rank | d_state (B) | d_state (C)]
        "x_proj_w": nrm(keys[5], (num_layers, d_inner, dt_rank + 2 * d_state),
                        1.0 / math.sqrt(d_inner), MXU_DTYPE),
        "dt_proj_w": nrm(keys[6], (num_layers, dt_rank, d_inner),
                         1.0 / math.sqrt(dt_rank), MXU_DTYPE),
        "dt_proj_b": jnp.full((num_layers, 1, d_inner), -2.0, jnp.float32),
        "A_T": jnp.tile(A_T[None], (num_layers, 1, 1)),         # (layers, d_state, d_inner)
        "D": jnp.ones((num_layers, 1, d_inner), jnp.float32),
        "out_proj_w": nrm(keys[7], (num_layers, d_inner, d_model),
                          1.0 / math.sqrt(d_inner), MXU_DTYPE),
    }
    return params


# ----------------------------------------------------------------------------
# Main
# ----------------------------------------------------------------------------
if __name__ == "__main__":
    # Small config consistent with MambaByteLM.__init__ hyperparameters.
    vocab_size = 256
    d_model = 32
    num_layers = 2
    d_state = 16
    d_conv = 4
    expand = 2
    norm_eps = 1e-5
    B, L = 2, 8

    key = jax.random.PRNGKey(0)
    params = init_params(key, vocab_size, d_model, num_layers, d_state, d_conv, expand)
    input_ids = jax.random.randint(
        jax.random.fold_in(key, 123), (B, L), 0, vocab_size, dtype=jnp.int32
    )

    fwd = jax.jit(partial(mambabyte_lm_forward, norm_eps=norm_eps))
    logits = jax.block_until_ready(fwd(input_ids, params))

    assert logits.shape == (B, L, vocab_size), logits.shape
    assert bool(jnp.all(jnp.isfinite(logits)))
    print("KERNEL_OK")
</pallas_src>

<mosaic_0001>
module attributes {stable_mosaic.version = 11 : i64} {
  func.func @_rmsnorm_kernel(%arg0: i32, %arg1: memref<16x32xbf16, #tpu.memory_space<vmem>>, %arg2: memref<1x32xf32, #tpu.memory_space<vmem>>, %arg3: memref<16x32xbf16, #tpu.memory_space<vmem>>) attributes {dimension_semantics = [#tpu.dimension_semantics<parallel>], iteration_bounds = array<i64: 1>, scalar_prefetch = 0 : i64, scratch_operands = 0 : i64, tpu.core_type = #tpu.core_type<tc>, window_params = [{transform_indices = @transform_0, window_bounds = array<i64: 16, 32>}, {pipeline_mode = #tpu.pipeline_mode<synchronous>, transform_indices = @transform_1, window_bounds = array<i64: 1, 32>}, {transform_indices = @transform_2, window_bounds = array<i64: 16, 32>}]} {
    %c0 = arith.constant 0 : index
    %c0_0 = arith.constant 0 : index
    %0 = vector.load %arg1[%c0, %c0_0] : memref<16x32xbf16, #tpu.memory_space<vmem>>, vector<16x32xbf16>
    %1 = arith.extf %0 : vector<16x32xbf16> to vector<16x32xf32>
    %2 = arith.mulf %1, %1 : vector<16x32xf32>
    %cst = arith.constant dense<0.000000e+00> : vector<16xf32>
    %3 = vector.multi_reduction <add>, %2, %cst [1] : vector<16x32xf32> to vector<16xf32>
    %4 = vector.shape_cast %3 : vector<16xf32> to vector<16x1xf32>
    %cst_1 = arith.constant 3.200000e+01 : f32
    %5 = vector.broadcast %cst_1 : f32 to vector<16x1xf32>
    %6 = arith.divf %4, %5 : vector<16x1xf32>
    %cst_2 = arith.constant 9.99999974E-6 : f32
    %7 = vector.broadcast %cst_2 : f32 to vector<16x1xf32>
    %8 = arith.addf %6, %7 : vector<16x1xf32>
    %9 = math.rsqrt %8 : vector<16x1xf32>
    %10 = vector.broadcast %9 : vector<16x1xf32> to vector<16x32xf32>
    %11 = arith.mulf %1, %10 : vector<16x32xf32>
    %c0_3 = arith.constant 0 : index
    %c0_4 = arith.constant 0 : index
    %12 = vector.load %arg2[%c0_3, %c0_4] : memref<1x32xf32, #tpu.memory_space<vmem>>, vector<1x32xf32>
    %13 = vector.broadcast %12 : vector<1x32xf32> to vector<16x32xf32>
    %14 = arith.mulf %11, %13 : vector<16x32xf32>
    %15 = arith.truncf %14 : vector<16x32xf32> to vector<16x32xbf16>
    %c0_5 = arith.constant 0 : index
    %c0_6 = arith.constant 0 : index
    %16 = vector.load %arg3[%c0_5, %c0_6] : memref<16x32xbf16, #tpu.memory_space<vmem>>, vector<16x32xbf16>
    tpu.vector_store %arg3[%c0_5, %c0_6], %15 {strides = array<i32>} : memref<16x32xbf16, #tpu.memory_space<vmem>>, vector<16x32xbf16>,
    return
  }
  func.func @transform_0(%arg0: i32) -> (i32, i32) {
    %c0_i32 = arith.constant 0 : i32
    %c0_i32_0 = arith.constant 0 : i32
    return %arg0, %c0_i32 : i32, i32
  }
  func.func @transform_1(%arg0: i32) -> (i32, i32) {
    %c0_i32 = arith.constant 0 : i32
    %c0_i32_0 = arith.constant 0 : i32
    %c0_i32_1 = arith.constant 0 : i32
    return %c0_i32, %c0_i32_0 : i32, i32
  }
  func.func @transform_2(%arg0: i32) -> (i32, i32) {
    %c0_i32 = arith.constant 0 : i32
    %c0_i32_0 = arith.constant 0 : i32
    return %arg0, %c0_i32 : i32, i32
  }
}

module attributes {stable_mosaic.version = 11 : i64} {
  func.func @_matmul_kernel(%arg0: i32, %arg1: i32, %arg2: i32, %arg3: memref<16x32xbf16, #tpu.memory_space<vmem>>, %arg4: memref<32x256xbf16, #tpu.memory_space<vmem>>, %arg5: memref<16x256xf32, #tpu.memory_space<vmem>>, %arg6: memref<16x256xf32, #tpu.memory_space<vmem>>) attributes {dimension_semantics = [#tpu.dimension_semantics<parallel>, #tpu.dimension_semantics<parallel>, #tpu.dimension_semantics<arbitrary>], iteration_bounds = array<i64: 1, 1, 1>, scalar_prefetch = 0 : i64, scratch_operands = 1 : i64, tpu.core_type = #tpu.core_type<tc>, window_params = [{transform_indices = @transform_0, window_bounds = array<i64: 16, 32>}, {transform_indices = @transform_1, window_bounds = array<i64: 32, 256>}, {transform_indices = @transform_2, window_bounds = array<i64: 16, 256>}]} {
    %c0_i32 = arith.constant 0 : i32
    %0 = arith.cmpi eq, %arg2, %c0_i32 : i32
    %1 = arith.extui %0 : i1 to i32
    %c0_i32_0 = arith.constant 0 : i32
    %2 = arith.cmpi ne, %1, %c0_i32_0 : i32
    scf.if %2 {
      %cst_10 = arith.constant 0.000000e+00 : f32
      %12 = vector.broadcast %cst_10 : f32 to vector<16x256xf32>
      %c0_11 = arith.constant 0 : index
      %c0_12 = arith.constant 0 : index
      %13 = vector.load %arg6[%c0_11, %c0_12] : memref<16x256xf32, #tpu.memory_space<vmem>>, vector<16x256xf32>
      tpu.vector_store %arg6[%c0_11, %c0_12], %12 {strides = array<i32>} : memref<16x256xf32, #tpu.memory_space<vmem>>, vector<16x256xf32>,
    } else {
    }
    %c0 = arith.constant 0 : index
    %c0_1 = arith.constant 0 : index
    %3 = vector.load %arg6[%c0, %c0_1] : memref<16x256xf32, #tpu.memory_space<vmem>>, vector<16x256xf32>
    %c0_2 = arith.constant 0 : index
    %c0_3 = arith.constant 0 : index
    %4 = vector.load %arg3[%c0_2, %c0_3] : memref<16x32xbf16, #tpu.memory_space<vmem>>, vector<16x32xbf16>
    %c0_4 = arith.constant 0 : index
    %c0_5 = arith.constant 0 : index
    %5 = vector.load %arg4[%c0_4, %c0_5] : memref<32x256xbf16, #tpu.memory_space<vmem>>, vector<32x256xbf16>
    %cst = arith.constant dense<0.000000e+00> : vector<16x256xf32>
    %6 = tpu.matmul %4, %5, %cst {dimension_numbers = #tpu.dot_dimension_numbers<[1], [0], [0], [1], [0, 0, 1, 1], [], []>} : vector<16x32xbf16>, vector<32x256xbf16>, vector<16x256xf32> -> vector<16x256xf32>
    %7 = arith.addf %3, %6 : vector<16x256xf32>
    %c0_6 = arith.constant 0 : index
    %c0_7 = arith.constant 0 : index
    %8 = vector.load %arg6[%c0_6, %c0_7] : memref<16x256xf32, #tpu.memory_space<vmem>>, vector<16x256xf32>
    tpu.vector_store %arg6[%c0_6, %c0_7], %7 {strides = array<i32>} : memref<16x256xf32, #tpu.memory_space<vmem>>, vector<16x256xf32>,
    %c0_i32_8 = arith.constant 0 : i32
    %9 = arith.cmpi eq, %arg2, %c0_i32_8 : i32
    %10 = arith.extui %9 : i1 to i32
    %c0_i32_9 = arith.constant 0 : i32
    %11 = arith.cmpi ne, %10, %c0_i32_9 : i32
    scf.if %11 {
      %c0_10 = arith.constant 0 : index
      %c0_11 = arith.constant 0 : index
      %12 = vector.load %arg6[%c0_10, %c0_11] : memref<16x256xf32, #tpu.memory_space<vmem>>, vector<16x256xf32>
      %c0_12 = arith.constant 0 : index
      %c0_13 = arith.constant 0 : index
      %13 = vector.load %arg5[%c0_12, %c0_13] : memref<16x256xf32, #tpu.memory_space<vmem>>, vector<16x256xf32>
      tpu.vector_store %arg5[%c0_12, %c0_13], %12 {strides = array<i32>} : memref<16x256xf32, #tpu.memory_space<vmem>>, vector<16x256xf32>,
    } else {
    }
    return
  }
  func.func @transform_0(%arg0: i32, %arg1: i32, %arg2: i32) -> (i32, i32) {
    %c0_i32 = arith.constant 0 : i32
    return %arg0, %arg2 : i32, i32
  }
  func.func @transform_1(%arg0: i32, %arg1: i32, %arg2: i32) -> (i32, i32) {
    %c0_i32 = arith.constant 0 : i32
    return %arg2, %arg1 : i32, i32
  }
  func.func @transform_2(%arg0: i32, %arg1: i32, %arg2: i32) -> (i32, i32) {
    %c0_i32 = arith.constant 0 : i32
    return %arg0, %arg1 : i32, i32
  }
}

module attributes {stable_mosaic.version = 11 : i64} {
  func.func @_mamba_layers_kernel(%arg0: i32, %arg1: i32, %arg2: memref<1x8x32xf32, #tpu.memory_space<vmem>>, %arg3: memref<1x1x32xf32, #tpu.memory_space<vmem>>, %arg4: memref<1x32x128xbf16, #tpu.memory_space<vmem>>, %arg5: memref<1x4x64xf32, #tpu.memory_space<vmem>>, %arg6: memref<1x1x64xf32, #tpu.memory_space<vmem>>, %arg7: memref<1x64x34xbf16, #tpu.memory_space<vmem>>, %arg8: memref<1x2x64xbf16, #tpu.memory_space<vmem>>, %arg9: memref<1x1x64xf32, #tpu.memory_space<vmem>>, %arg10: memref<1x16x64xf32, #tpu.memory_space<vmem>>, %arg11: memref<1x1x64xf32, #tpu.memory_space<vmem>>, %arg12: memref<1x64x32xbf16, #tpu.memory_space<vmem>>, %arg13: memref<1x8x32xbf16, #tpu.memory_space<vmem>>, %arg14: memref<8x32xf32, #tpu.memory_space<vmem>>, %arg15: memref<8x64xf32, #tpu.memory_space<vmem>>, %arg16: memref<8x64xf32, #tpu.memory_space<vmem>>, %arg17: memref<8x16xf32, #tpu.memory_space<vmem>>, %arg18: memref<8x16xf32, #tpu.memory_space<vmem>>, %arg19: memref<8x64xf32, #tpu.memory_space<vmem>>, %arg20: memref<8x16x64xf32, #tpu.memory_space<vmem>>) attributes {dimension_semantics = [#tpu.dimension_semantics<parallel>, #tpu.dimension_semantics<arbitrary>], iteration_bounds = array<i64: 2, 2>, scalar_prefetch = 0 : i64, scratch_operands = 7 : i64, tpu.core_type = #tpu.core_type<tc>, window_params = [{transform_indices = @transform_0, window_bounds = array<i64: 1, 8, 32>}, {transform_indices = @transform_1, window_bounds = array<i64: 1, 1, 32>}, {transform_indices = @transform_2, window_bounds = array<i64: 1, 32, 128>}, {transform_indices = @transform_3, window_bounds = array<i64: 1, 4, 64>}, {transform_indices = @transform_4, window_bounds = array<i64: 1, 1, 64>}, {transform_indices = @transform_5, window_bounds = array<i64: 1, 64, 34>}, {transform_indices = @transform_6, window_bounds = array<i64: 1, 2, 64>}, {transform_indices = @transform_7, window_bounds = array<i64: 1, 1, 64>}, {transform_indices = @transform_8, window_bounds = array<i64: 1, 16, 64>}, {transform_indices = @transform_9, window_bounds = array<i64: 1, 1, 64>}, {transform_indices = @transform_10, window_bounds = array<i64: 1, 64, 32>}, {transform_indices = @transform_11, window_bounds = array<i64: 1, 8, 32>}]} {
    %c0_i32 = arith.constant 0 : i32
    %0 = arith.cmpi eq, %arg1, %c0_i32 : i32
    %1 = arith.extui %0 : i1 to i32
    %c0_i32_0 = arith.constant 0 : i32
    %2 = arith.cmpi ne, %1, %c0_i32_0 : i32
    scf.if %2 {
      %c0_151 = arith.constant 0 : index
      %c0_152 = arith.constant 0 : index
      %c0_153 = arith.constant 0 : index
      %367 = vector.load %arg2[%c0_151, %c0_152, %c0_153] : memref<1x8x32xf32, #tpu.memory_space<vmem>>, vector<1x8x32xf32>
      %368 = vector.shape_cast %367 : vector<1x8x32xf32> to vector<8x32xf32>
      %c0_154 = arith.constant 0 : index
      %c0_155 = arith.constant 0 : index
      %369 = vector.load %arg14[%c0_154, %c0_155] : memref<8x32xf32, #tpu.memory_space<vmem>>, vector<8x32xf32>
      tpu.vector_store %arg14[%c0_154, %c0_155], %368 {strides = array<i32>} : memref<8x32xf32, #tpu.memory_space<vmem>>, vector<8x32xf32>,
    } else {
    }
    %c0 = arith.constant 0 : index
    %c0_1 = arith.constant 0 : index
    %3 = vector.load %arg14[%c0, %c0_1] : memref<8x32xf32, #tpu.memory_space<vmem>>, vector<8x32xf32>
    %4 = arith.mulf %3, %3 : vector<8x32xf32>
    %cst = arith.constant dense<0.000000e+00> : vector<8xf32>
    %5 = vector.multi_reduction <add>, %4, %cst [1] : vector<8x32xf32> to vector<8xf32>
    %6 = vector.shape_cast %5 : vector<8xf32> to vector<8x1xf32>
    %cst_2 = arith.constant 3.200000e+01 : f32
    %7 = vector.broadcast %cst_2 : f32 to vector<8x1xf32>
    %8 = arith.divf %6, %7 : vector<8x1xf32>
    %cst_3 = arith.constant 9.99999974E-6 : f32
    %9 = vector.broadcast %cst_3 : f32 to vector<8x1xf32>
    %10 = arith.addf %8, %9 : vector<8x1xf32>
    %11 = math.rsqrt %10 : vector<8x1xf32>
    %12 = vector.broadcast %11 : vector<8x1xf32> to vector<8x32xf32>
    %13 = arith.mulf %3, %12 : vector<8x32xf32>
    %c0_4 = arith.constant 0 : index
    %c0_5 = arith.constant 0 : index
    %c0_6 = arith.constant 0 : index
    %14 = vector.load %arg3[%c0_4, %c0_5, %c0_6] : memref<1x1x32xf32, #tpu.memory_space<vmem>>, vector<1x1x32xf32>
    %15 = vector.shape_cast %14 : vector<1x1x32xf32> to vector<1x32xf32>
    %16 = vector.broadcast %15 : vector<1x32xf32> to vector<8x32xf32>
    %17 = arith.mulf %13, %16 : vector<8x32xf32>
    %18 = arith.truncf %17 : vector<8x32xf32> to vector<8x32xbf16>
    %c0_7 = arith.constant 0 : index
    %c0_8 = arith.constant 0 : index
    %c0_9 = arith.constant 0 : index
    %19 = vector.load %arg4[%c0_7, %c0_8, %c0_9] : memref<1x32x128xbf16, #tpu.memory_space<vmem>>, vector<1x32x128xbf16>
    %20 = vector.shape_cast %19 : vector<1x32x128xbf16> to vector<32x128xbf16>
    %cst_10 = arith.constant dense<0.000000e+00> : vector<8x128xf32>
    %21 = tpu.matmul %18, %20, %cst_10 {dimension_numbers = #tpu.dot_dimension_numbers<[1], [0], [0], [1], [0, 0, 1, 1], [], []>} : vector<8x32xbf16>, vector<32x128xbf16>, vector<8x128xf32> -> vector<8x128xf32>
    %22 = vector.extract_strided_slice %21 {offsets = [0, 0], sizes = [8, 64], strides = [1, 1]} : vector<8x128xf32> to vector<8x64xf32>
    %23 = vector.extract_strided_slice %21 {offsets = [0, 64], sizes = [8, 64], strides = [1, 1]} : vector<8x128xf32> to vector<8x64xf32>
    %c0_11 = arith.constant 0 : index
    %c0_12 = arith.constant 0 : index
    %c0_13 = arith.constant 0 : index
    %24 = vector.load %arg5[%c0_11, %c0_12, %c0_13] : memref<1x4x64xf32, #tpu.memory_space<vmem>>, vector<1x4x64xf32>
    %25 = vector.shape_cast %24 : vector<1x4x64xf32> to vector<4x64xf32>
    %26 = tpu.iota {dimensions = array<i32: 0>} : vector<8x1xi32>
    %27 = vector.extract_strided_slice %25 {offsets = [3, 0], sizes = [1, 64], strides = [1, 1]} : vector<4x64xf32> to vector<1x64xf32>
    %28 = vector.broadcast %27 : vector<1x64xf32> to vector<8x64xf32>
    %29 = arith.mulf %22, %28 : vector<8x64xf32>
    %c3_i32 = arith.constant 3 : i32
    %30 = tpu.dynamic_rotate %22 by %c3_i32 dim 0 : vector<8x64xf32>, i32 -> vector<8x64xf32>
    %c3_i32_14 = arith.constant 3 : i32
    %31 = vector.broadcast %c3_i32_14 : i32 to vector<8x1xi32>
    %32 = arith.cmpi sge, %26, %31 : vector<8x1xi32>
    %cst_15 = arith.constant 0.000000e+00 : f32
    %33 = vector.shape_cast %32 : vector<8x1xi1> to vector<8x1xi1>
    %34 = vector.broadcast %33 : vector<8x1xi1> to vector<8x64xi1>
    %35 = vector.broadcast %cst_15 : f32 to vector<8x64xf32>
    %36 = arith.select %34, %30, %35 : vector<8x64xi1>, vector<8x64xf32>
    %37 = vector.extract_strided_slice %25 {offsets = [0, 0], sizes = [1, 64], strides = [1, 1]} : vector<4x64xf32> to vector<1x64xf32>
    %38 = vector.broadcast %37 : vector<1x64xf32> to vector<8x64xf32>
    %39 = arith.mulf %36, %38 : vector<8x64xf32>
    %40 = arith.addf %29, %39 : vector<8x64xf32>
    %c2_i32 = arith.constant 2 : i32
    %41 = tpu.dynamic_rotate %22 by %c2_i32 dim 0 : vector<8x64xf32>, i32 -> vector<8x64xf32>
    %c2_i32_16 = arith.constant 2 : i32
    %42 = vector.broadcast %c2_i32_16 : i32 to vector<8x1xi32>
    %43 = arith.cmpi sge, %26, %42 : vector<8x1xi32>
    %cst_17 = arith.constant 0.000000e+00 : f32
    %44 = vector.shape_cast %43 : vector<8x1xi1> to vector<8x1xi1>
    %45 = vector.broadcast %44 : vector<8x1xi1> to vector<8x64xi1>
    %46 = vector.broadcast %cst_17 : f32 to vector<8x64xf32>
    %47 = arith.select %45, %41, %46 : vector<8x64xi1>, vector<8x64xf32>
    %48 = vector.extract_strided_slice %25 {offsets = [1, 0], sizes = [1, 64], strides = [1, 1]} : vector<4x64xf32> to vector<1x64xf32>
    %49 = vector.broadcast %48 : vector<1x64xf32> to vector<8x64xf32>
    %50 = arith.mulf %47, %49 : vector<8x64xf32>
    %51 = arith.addf %40, %50 : vector<8x64xf32>
    %c1_i32 = arith.constant 1 : i32
    %52 = tpu.dynamic_rotate %22 by %c1_i32 dim 0 : vector<8x64xf32>, i32 -> vector<8x64xf32>
    %c1_i32_18 = arith.constant 1 : i32
    %53 = vector.broadcast %c1_i32_18 : i32 to vector<8x1xi32>
    %54 = arith.cmpi sge, %26, %53 : vector<8x1xi32>
    %cst_19 = arith.constant 0.000000e+00 : f32
    %55 = vector.shape_cast %54 : vector<8x1xi1> to vector<8x1xi1>
    %56 = vector.broadcast %55 : vector<8x1xi1> to vector<8x64xi1>
    %57 = vector.broadcast %cst_19 : f32 to vector<8x64xf32>
    %58 = arith.select %56, %52, %57 : vector<8x64xi1>, vector<8x64xf32>
    %59 = vector.extract_strided_slice %25 {offsets = [2, 0], sizes = [1, 64], strides = [1, 1]} : vector<4x64xf32> to vector<1x64xf32>
    %60 = vector.broadcast %59 : vector<1x64xf32> to vector<8x64xf32>
    %61 = arith.mulf %58, %60 : vector<8x64xf32>
    %62 = arith.addf %51, %61 : vector<8x64xf32>
    %c0_20 = arith.constant 0 : index
    %c0_21 = arith.constant 0 : index
    %c0_22 = arith.constant 0 : index
    %63 = vector.load %arg6[%c0_20, %c0_21, %c0_22] : memref<1x1x64xf32, #tpu.memory_space<vmem>>, vector<1x1x64xf32>
    %64 = vector.shape_cast %63 : vector<1x1x64xf32> to vector<1x64xf32>
    %65 = vector.broadcast %64 : vector<1x64xf32> to vector<8x64xf32>
    %66 = arith.addf %62, %65 : vector<8x64xf32>
    %cst_23 = arith.constant 0.000000e+00 : f32
    %67 = vector.broadcast %cst_23 : f32 to vector<8x64xf32>
    %68 = arith.subf %67, %66 : vector<8x64xf32>
    %69 = math.exp %68 : vector<8x64xf32>
    %cst_24 = arith.constant 1.000000e+00 : f32
    %70 = vector.broadcast %cst_24 : f32 to vector<8x64xf32>
    %71 = arith.addf %70, %69 : vector<8x64xf32>
    %cst_25 = arith.constant 1.000000e+00 : f32
    %72 = vector.broadcast %cst_25 : f32 to vector<8x64xf32>
    %73 = arith.divf %72, %71 : vector<8x64xf32>
    %74 = arith.mulf %66, %73 : vector<8x64xf32>
    %c0_26 = arith.constant 0 : index
    %c0_27 = arith.constant 0 : index
    %75 = vector.load %arg15[%c0_26, %c0_27] : memref<8x64xf32, #tpu.memory_space<vmem>>, vector<8x64xf32>
    tpu.vector_store %arg15[%c0_26, %c0_27], %74 {strides = array<i32>} : memref<8x64xf32, #tpu.memory_space<vmem>>, vector<8x64xf32>,
    %76 = arith.truncf %74 : vector<8x64xf32> to vector<8x64xbf16>
    %c0_28 = arith.constant 0 : index
    %c0_29 = arith.constant 0 : index
    %c0_30 = arith.constant 0 : index
    %77 = vector.load %arg7[%c0_28, %c0_29, %c0_30] : memref<1x64x34xbf16, #tpu.memory_space<vmem>>, vector<1x64x34xbf16>
    %78 = vector.shape_cast %77 : vector<1x64x34xbf16> to vector<64x34xbf16>
    %cst_31 = arith.constant dense<0.000000e+00> : vector<8x34xf32>
    %79 = tpu.matmul %76, %78, %cst_31 {dimension_numbers = #tpu.dot_dimension_numbers<[1], [0], [0], [1], [0, 0, 1, 1], [], []>} : vector<8x64xbf16>, vector<64x34xbf16>, vector<8x34xf32> -> vector<8x34xf32>
    %80 = vector.extract_strided_slice %79 {offsets = [0, 0], sizes = [8, 2], strides = [1, 1]} : vector<8x34xf32> to vector<8x2xf32>
    %81 = vector.extract_strided_slice %79 {offsets = [0, 2], sizes = [8, 16], strides = [1, 1]} : vector<8x34xf32> to vector<8x16xf32>
    %c0_32 = arith.constant 0 : index
    %c0_33 = arith.constant 0 : index
    %82 = vector.load %arg17[%c0_32, %c0_33] : memref<8x16xf32, #tpu.memory_space<vmem>>, vector<8x16xf32>
    tpu.vector_store %arg17[%c0_32, %c0_33], %81 {strides = array<i32>} : memref<8x16xf32, #tpu.memory_space<vmem>>, vector<8x16xf32>,
    %83 = vector.extract_strided_slice %79 {offsets = [0, 18], sizes = [8, 16], strides = [1, 1]} : vector<8x34xf32> to vector<8x16xf32>
    %c0_34 = arith.constant 0 : index
    %c0_35 = arith.constant 0 : index
    %84 = vector.load %arg18[%c0_34, %c0_35] : memref<8x16xf32, #tpu.memory_space<vmem>>, vector<8x16xf32>
    tpu.vector_store %arg18[%c0_34, %c0_35], %83 {strides = array<i32>} : memref<8x16xf32, #tpu.memory_space<vmem>>, vector<8x16xf32>,
    %85 = arith.truncf %80 : vector<8x2xf32> to vector<8x2xbf16>
    %c0_36 = arith.constant 0 : index
    %c0_37 = arith.constant 0 : index
    %c0_38 = arith.constant 0 : index
    %86 = vector.load %arg8[%c0_36, %c0_37, %c0_38] : memref<1x2x64xbf16, #tpu.memory_space<vmem>>, vector<1x2x64xbf16>
    %87 = vector.shape_cast %86 : vector<1x2x64xbf16> to vector<2x64xbf16>
    %cst_39 = arith.constant dense<0.000000e+00> : vector<8x64xf32>
    %88 = tpu.matmul %85, %87, %cst_39 {dimension_numbers = #tpu.dot_dimension_numbers<[1], [0], [0], [1], [0, 0, 1, 1], [], []>} : vector<8x2xbf16>, vector<2x64xbf16>, vector<8x64xf32> -> vector<8x64xf32>
    %c0_40 = arith.constant 0 : index
    %c0_41 = arith.constant 0 : index
    %c0_42 = arith.constant 0 : index
    %89 = vector.load %arg9[%c0_40, %c0_41, %c0_42] : memref<1x1x64xf32, #tpu.memory_space<vmem>>, vector<1x1x64xf32>
    %90 = vector.shape_cast %89 : vector<1x1x64xf32> to vector<1x64xf32>
    %91 = vector.broadcast %90 : vector<1x64xf32> to vector<8x64xf32>
    %92 = arith.addf %88, %91 : vector<8x64xf32>
    %cst_43 = arith.constant 2.000000e+01 : f32
    %93 = vector.broadcast %cst_43 : f32 to vector<8x64xf32>
    %94 = arith.cmpf ogt, %92, %93 : vector<8x64xf32>
    %cst_44 = arith.constant 2.000000e+01 : f32
    %95 = vector.broadcast %cst_44 : f32 to vector<8x64xf32>
    %96 = arith.minimumf %92, %95 : vector<8x64xf32>
    %97 = math.exp %96 : vector<8x64xf32>
    %cst_45 = arith.constant 1.000000e+00 : f32
    %98 = vector.broadcast %cst_45 : f32 to vector<8x64xf32>
    %99 = arith.addf %98, %97 : vector<8x64xf32>
    %100 = math.log %99 : vector<8x64xf32>
    %101 = arith.select %94, %92, %100 : vector<8x64xi1>, vector<8x64xf32>
    %c0_46 = arith.constant 0 : index
    %c0_47 = arith.constant 0 : index
    %102 = vector.load %arg16[%c0_46, %c0_47] : memref<8x64xf32, #tpu.memory_space<vmem>>, vector<8x64xf32>
    tpu.vector_store %arg16[%c0_46, %c0_47], %101 {strides = array<i32>} : memref<8x64xf32, #tpu.memory_space<vmem>>, vector<8x64xf32>,
    %c0_48 = arith.constant 0 : index
    %c0_49 = arith.constant 0 : index
    %c0_50 = arith.constant 0 : index
    %103 = vector.load %arg10[%c0_48, %c0_49, %c0_50] : memref<1x16x64xf32, #tpu.memory_space<vmem>>, vector<1x16x64xf32>
    %104 = vector.shape_cast %103 : vector<1x16x64xf32> to vector<16x64xf32>
    %c0_i32_51 = arith.constant 0 : i32
    %105 = arith.index_cast %c0_i32_51 : i32 to index
    %c0_52 = arith.constant 0 : index
    %106 = vector.load %arg16[%105, %c0_52] : memref<8x64xf32, #tpu.memory_space<vmem>>, vector<1x64xf32>
    %107 = vector.broadcast %106 : vector<1x64xf32> to vector<16x64xf32>
    %108 = arith.mulf %107, %104 : vector<16x64xf32>
    %109 = math.exp %108 : vector<16x64xf32>
    %110 = arith.index_cast %c0_i32_51 : i32 to index
    %c0_53 = arith.constant 0 : index
    %c0_54 = arith.constant 0 : index
    %111 = vector.load %arg20[%110, %c0_53, %c0_54] : memref<8x16x64xf32, #tpu.memory_space<vmem>>, vector<1x16x64xf32>
    %112 = vector.shape_cast %111 : vector<1x16x64xf32> to vector<16x64xf32>
    %113 = vector.shape_cast %109 : vector<16x64xf32> to vector<1x16x64xf32>
    tpu.vector_store %arg20[%110, %c0_53, %c0_54], %113 {strides = array<i32>} : memref<8x16x64xf32, #tpu.memory_space<vmem>>, vector<1x16x64xf32>,
    %c1_i32_55 = arith.constant 1 : i32
    %114 = arith.index_cast %c1_i32_55 : i32 to index
    %c0_56 = arith.constant 0 : index
    %115 = vector.load %arg16[%114, %c0_56] : memref<8x64xf32, #tpu.memory_space<vmem>>, vector<1x64xf32>
    %116 = vector.broadcast %115 : vector<1x64xf32> to vector<16x64xf32>
    %117 = arith.mulf %116, %104 : vector<16x64xf32>
    %118 = math.exp %117 : vector<16x64xf32>
    %119 = arith.index_cast %c1_i32_55 : i32 to index
    %c0_57 = arith.constant 0 : index
    %c0_58 = arith.constant 0 : index
    %120 = vector.load %arg20[%119, %c0_57, %c0_58] : memref<8x16x64xf32, #tpu.memory_space<vmem>>, vector<1x16x64xf32>
    %121 = vector.shape_cast %120 : vector<1x16x64xf32> to vector<16x64xf32>
    %122 = vector.shape_cast %118 : vector<16x64xf32> to vector<1x16x64xf32>
    tpu.vector_store %arg20[%119, %c0_57, %c0_58], %122 {strides = array<i32>} : memref<8x16x64xf32, #tpu.memory_space<vmem>>, vector<1x16x64xf32>,
    %c2_i32_59 = arith.constant 2 : i32
    %123 = arith.index_cast %c2_i32_59 : i32 to index
    %c0_60 = arith.constant 0 : index
    %124 = vector.load %arg16[%123, %c0_60] : memref<8x64xf32, #tpu.memory_space<vmem>>, vector<1x64xf32>
    %125 = vector.broadcast %124 : vector<1x64xf32> to vector<16x64xf32>
    %126 = arith.mulf %125, %104 : vector<16x64xf32>
    %127 = math.exp %126 : vector<16x64xf32>
    %128 = arith.index_cast %c2_i32_59 : i32 to index
    %c0_61 = arith.constant 0 : index
    %c0_62 = arith.constant 0 : index
    %129 = vector.load %arg20[%128, %c0_61, %c0_62] : memref<8x16x64xf32, #tpu.memory_space<vmem>>, vector<1x16x64xf32>
    %130 = vector.shape_cast %129 : vector<1x16x64xf32> to vector<16x64xf32>
    %131 = vector.shape_cast %127 : vector<16x64xf32> to vector<1x16x64xf32>
    tpu.vector_store %arg20[%128, %c0_61, %c0_62], %131 {strides = array<i32>} : memref<8x16x64xf32, #tpu.memory_space<vmem>>, vector<1x16x64xf32>,
    %c3_i32_63 = arith.constant 3 : i32
    %132 = arith.index_cast %c3_i32_63 : i32 to index
    %c0_64 = arith.constant 0 : index
    %133 = vector.load %arg16[%132, %c0_64] : memref<8x64xf32, #tpu.memory_space<vmem>>, vector<1x64xf32>
    %134 = vector.broadcast %133 : vector<1x64xf32> to vector<16x64xf32>
    %135 = arith.mulf %134, %104 : vector<16x64xf32>
    %136 = math.exp %135 : vector<16x64xf32>
    %137 = arith.index_cast %c3_i32_63 : i32 to index
    %c0_65 = arith.constant 0 : index
    %c0_66 = arith.constant 0 : index
    %138 = vector.load %arg20[%137, %c0_65, %c0_66] : memref<8x16x64xf32, #tpu.memory_space<vmem>>, vector<1x16x64xf32>
    %139 = vector.shape_cast %138 : vector<1x16x64xf32> to vector<16x64xf32>
    %140 = vector.shape_cast %136 : vector<16x64xf32> to vector<1x16x64xf32>
    tpu.vector_store %arg20[%137, %c0_65, %c0_66], %140 {strides = array<i32>} : memref<8x16x64xf32, #tpu.memory_space<vmem>>, vector<1x16x64xf32>,
    %c4_i32 = arith.constant 4 : i32
    %141 = arith.index_cast %c4_i32 : i32 to index
    %c0_67 = arith.constant 0 : index
    %142 = vector.load %arg16[%141, %c0_67] : memref<8x64xf32, #tpu.memory_space<vmem>>, vector<1x64xf32>
    %143 = vector.broadcast %142 : vector<1x64xf32> to vector<16x64xf32>
    %144 = arith.mulf %143, %104 : vector<16x64xf32>
    %145 = math.exp %144 : vector<16x64xf32>
    %146 = arith.index_cast %c4_i32 : i32 to index
    %c0_68 = arith.constant 0 : index
    %c0_69 = arith.constant 0 : index
    %147 = vector.load %arg20[%146, %c0_68, %c0_69] : memref<8x16x64xf32, #tpu.memory_space<vmem>>, vector<1x16x64xf32>
    %148 = vector.shape_cast %147 : vector<1x16x64xf32> to vector<16x64xf32>
    %149 = vector.shape_cast %145 : vector<16x64xf32> to vector<1x16x64xf32>
    tpu.vector_store %arg20[%146, %c0_68, %c0_69], %149 {strides = array<i32>} : memref<8x16x64xf32, #tpu.memory_space<vmem>>, vector<1x16x64xf32>,
    %c5_i32 = arith.constant 5 : i32
    %150 = arith.index_cast %c5_i32 : i32 to index
    %c0_70 = arith.constant 0 : index
    %151 = vector.load %arg16[%150, %c0_70] : memref<8x64xf32, #tpu.memory_space<vmem>>, vector<1x64xf32>
    %152 = vector.broadcast %151 : vector<1x64xf32> to vector<16x64xf32>
    %153 = arith.mulf %152, %104 : vector<16x64xf32>
    %154 = math.exp %153 : vector<16x64xf32>
    %155 = arith.index_cast %c5_i32 : i32 to index
    %c0_71 = arith.constant 0 : index
    %c0_72 = arith.constant 0 : index
    %156 = vector.load %arg20[%155, %c0_71, %c0_72] : memref<8x16x64xf32, #tpu.memory_space<vmem>>, vector<1x16x64xf32>
    %157 = vector.shape_cast %156 : vector<1x16x64xf32> to vector<16x64xf32>
    %158 = vector.shape_cast %154 : vector<16x64xf32> to vector<1x16x64xf32>
    tpu.vector_store %arg20[%155, %c0_71, %c0_72], %158 {strides = array<i32>} : memref<8x16x64xf32, #tpu.memory_space<vmem>>, vector<1x16x64xf32>,
    %c6_i32 = arith.constant 6 : i32
    %159 = arith.index_cast %c6_i32 : i32 to index
    %c0_73 = arith.constant 0 : index
    %160 = vector.load %arg16[%159, %c0_73] : memref<8x64xf32, #tpu.memory_space<vmem>>, vector<1x64xf32>
    %161 = vector.broadcast %160 : vector<1x64xf32> to vector<16x64xf32>
    %162 = arith.mulf %161, %104 : vector<16x64xf32>
    %163 = math.exp %162 : vector<16x64xf32>
    %164 = arith.index_cast %c6_i32 : i32 to index
    %c0_74 = arith.constant 0 : index
    %c0_75 = arith.constant 0 : index
    %165 = vector.load %arg20[%164, %c0_74, %c0_75] : memref<8x16x64xf32, #tpu.memory_space<vmem>>, vector<1x16x64xf32>
    %166 = vector.shape_cast %165 : vector<1x16x64xf32> to vector<16x64xf32>
    %167 = vector.shape_cast %163 : vector<16x64xf32> to vector<1x16x64xf32>
    tpu.vector_store %arg20[%164, %c0_74, %c0_75], %167 {strides = array<i32>} : memref<8x16x64xf32, #tpu.memory_space<vmem>>, vector<1x16x64xf32>,
    %c7_i32 = arith.constant 7 : i32
    %168 = arith.index_cast %c7_i32 : i32 to index
    %c0_76 = arith.constant 0 : index
    %169 = vector.load %arg16[%168, %c0_76] : memref<8x64xf32, #tpu.memory_space<vmem>>, vector<1x64xf32>
    %170 = vector.broadcast %169 : vector<1x64xf32> to vector<16x64xf32>
    %171 = arith.mulf %170, %104 : vector<16x64xf32>
    %172 = math.exp %171 : vector<16x64xf32>
    %173 = arith.index_cast %c7_i32 : i32 to index
    %c0_77 = arith.constant 0 : index
    %c0_78 = arith.constant 0 : index
    %174 = vector.load %arg20[%173, %c0_77, %c0_78] : memref<8x16x64xf32, #tpu.memory_space<vmem>>, vector<1x16x64xf32>
    %175 = vector.shape_cast %174 : vector<1x16x64xf32> to vector<16x64xf32>
    %176 = vector.shape_cast %172 : vector<16x64xf32> to vector<1x16x64xf32>
    tpu.vector_store %arg20[%173, %c0_77, %c0_78], %176 {strides = array<i32>} : memref<8x16x64xf32, #tpu.memory_space<vmem>>, vector<1x16x64xf32>,
    %c8_i32 = arith.constant 8 : i32
    %cst_79 = arith.constant 0.000000e+00 : f32
    %177 = vector.broadcast %cst_79 : f32 to vector<16x64xf32>
    %c0_i32_80 = arith.constant 0 : i32
    %c8_i32_81 = arith.constant 8 : i32
    %178 = arith.muli %c0_i32_80, %c8_i32_81 : i32
    %179 = tpu.assume_multiple %178, 8 : i32
    %180 = arith.index_cast %179 : i32 to index
    %c0_82 = arith.constant 0 : index
    %181 = vector.load %arg17[%180, %c0_82] : memref<8x16xf32, #tpu.memory_space<vmem>>, vector<8x16xf32>
    %182 = tpu.transpose %181, [1, 0] : vector<8x16xf32> -> vector<16x8xf32>
    %183 = arith.index_cast %179 : i32 to index
    %c0_83 = arith.constant 0 : index
    %184 = vector.load %arg18[%183, %c0_83] : memref<8x16xf32, #tpu.memory_space<vmem>>, vector<8x16xf32>
    %185 = tpu.transpose %184, [1, 0] : vector<8x16xf32> -> vector<16x8xf32>
    %186 = arith.index_cast %179 : i32 to index
    %c0_84 = arith.constant 0 : index
    %187 = vector.load %arg16[%186, %c0_84] : memref<8x64xf32, #tpu.memory_space<vmem>>, vector<8x64xf32>
    %188 = arith.index_cast %179 : i32 to index
    %c0_85 = arith.constant 0 : index
    %189 = vector.load %arg15[%188, %c0_85] : memref<8x64xf32, #tpu.memory_space<vmem>>, vector<8x64xf32>
    %190 = arith.mulf %187, %189 : vector<8x64xf32>
    %191 = vector.extract_strided_slice %182 {offsets = [0, 0], sizes = [16, 1], strides = [1, 1]} : vector<16x8xf32> to vector<16x1xf32>
    %192 = vector.extract_strided_slice %190 {offsets = [0, 0], sizes = [1, 64], strides = [1, 1]} : vector<8x64xf32> to vector<1x64xf32>
    %193 = vector.broadcast %191 : vector<16x1xf32> to vector<16x64xf32>
    %194 = vector.broadcast %192 : vector<1x64xf32> to vector<16x64xf32>
    %195 = arith.mulf %193, %194 : vector<16x64xf32>
    %c0_i32_86 = arith.constant 0 : i32
    %196 = arith.addi %179, %c0_i32_86 : i32
    %197 = arith.index_cast %196 : i32 to index
    %c0_87 = arith.constant 0 : index
    %c0_88 = arith.constant 0 : index
    %198 = vector.load %arg20[%197, %c0_87, %c0_88] : memref<8x16x64xf32, #tpu.memory_space<vmem>>, vector<1x16x64xf32>
    %199 = vector.shape_cast %198 : vector<1x16x64xf32> to vector<16x64xf32>
    %200 = arith.mulf %199, %177 : vector<16x64xf32>
    %201 = arith.addf %200, %195 : vector<16x64xf32>
    %202 = vector.extract_strided_slice %185 {offsets = [0, 0], sizes = [16, 1], strides = [1, 1]} : vector<16x8xf32> to vector<16x1xf32>
    %203 = vector.broadcast %202 : vector<16x1xf32> to vector<16x64xf32>
    %204 = arith.mulf %203, %201 : vector<16x64xf32>
    %cst_89 = arith.constant dense<0.000000e+00> : vector<64xf32>
    %205 = vector.multi_reduction <add>, %204, %cst_89 [0] : vector<16x64xf32> to vector<64xf32>
    %206 = vector.shape_cast %205 : vector<64xf32> to vector<1x64xf32>
    %c0_i32_90 = arith.constant 0 : i32
    %207 = arith.addi %179, %c0_i32_90 : i32
    %208 = arith.index_cast %207 : i32 to index
    %c0_91 = arith.constant 0 : index
    %209 = vector.load %arg19[%208, %c0_91] : memref<8x64xf32, #tpu.memory_space<vmem>>, vector<1x64xf32>
    tpu.vector_store %arg19[%208, %c0_91], %206 {strides = array<i32>} : memref<8x64xf32, #tpu.memory_space<vmem>>, vector<1x64xf32>,
    %210 = vector.extract_strided_slice %182 {offsets = [0, 1], sizes = [16, 1], strides = [1, 1]} : vector<16x8xf32> to vector<16x1xf32>
    %211 = vector.extract_strided_slice %190 {offsets = [1, 0], sizes = [1, 64], strides = [1, 1]} : vector<8x64xf32> to vector<1x64xf32>
    %212 = vector.broadcast %210 : vector<16x1xf32> to vector<16x64xf32>
    %213 = vector.broadcast %211 : vector<1x64xf32> to vector<16x64xf32>
    %214 = arith.mulf %212, %213 : vector<16x64xf32>
    %c1_i32_92 = arith.constant 1 : i32
    %215 = arith.addi %179, %c1_i32_92 : i32
    %216 = arith.index_cast %215 : i32 to index
    %c0_93 = arith.constant 0 : index
    %c0_94 = arith.constant 0 : index
    %217 = vector.load %arg20[%216, %c0_93, %c0_94] : memref<8x16x64xf32, #tpu.memory_space<vmem>>, vector<1x16x64xf32>
    %218 = vector.shape_cast %217 : vector<1x16x64xf32> to vector<16x64xf32>
    %219 = arith.mulf %218, %201 : vector<16x64xf32>
    %220 = arith.addf %219, %214 : vector<16x64xf32>
    %221 = vector.extract_strided_slice %185 {offsets = [0, 1], sizes = [16, 1], strides = [1, 1]} : vector<16x8xf32> to vector<16x1xf32>
    %222 = vector.broadcast %221 : vector<16x1xf32> to vector<16x64xf32>
    %223 = arith.mulf %222, %220 : vector<16x64xf32>
    %cst_95 = arith.constant dense<0.000000e+00> : vector<64xf32>
    %224 = vector.multi_reduction <add>, %223, %cst_95 [0] : vector<16x64xf32> to vector<64xf32>
    %225 = vector.shape_cast %224 : vector<64xf32> to vector<1x64xf32>
    %c1_i32_96 = arith.constant 1 : i32
    %226 = arith.addi %179, %c1_i32_96 : i32
    %227 = arith.index_cast %226 : i32 to index
    %c0_97 = arith.constant 0 : index
    %228 = vector.load %arg19[%227, %c0_97] : memref<8x64xf32, #tpu.memory_space<vmem>>, vector<1x64xf32>
    tpu.vector_store %arg19[%227, %c0_97], %225 {strides = array<i32>} : memref<8x64xf32, #tpu.memory_space<vmem>>, vector<1x64xf32>,
    %229 = vector.extract_strided_slice %182 {offsets = [0, 2], sizes = [16, 1], strides = [1, 1]} : vector<16x8xf32> to vector<16x1xf32>
    %230 = vector.extract_strided_slice %190 {offsets = [2, 0], sizes = [1, 64], strides = [1, 1]} : vector<8x64xf32> to vector<1x64xf32>
    %231 = vector.broadcast %229 : vector<16x1xf32> to vector<16x64xf32>
    %232 = vector.broadcast %230 : vector<1x64xf32> to vector<16x64xf32>
    %233 = arith.mulf %231, %232 : vector<16x64xf32>
    %c2_i32_98 = arith.constant 2 : i32
    %234 = arith.addi %179, %c2_i32_98 : i32
    %235 = arith.index_cast %234 : i32 to index
    %c0_99 = arith.constant 0 : index
    %c0_100 = arith.constant 0 : index
    %236 = vector.load %arg20[%235, %c0_99, %c0_100] : memref<8x16x64xf32, #tpu.memory_space<vmem>>, vector<1x16x64xf32>
    %237 = vector.shape_cast %236 : vector<1x16x64xf32> to vector<16x64xf32>
    %238 = arith.mulf %237, %220 : vector<16x64xf32>
    %239 = arith.addf %238, %233 : vector<16x64xf32>
    %240 = vector.extract_strided_slice %185 {offsets = [0, 2], sizes = [16, 1], strides = [1, 1]} : vector<16x8xf32> to vector<16x1xf32>
    %241 = vector.broadcast %240 : vector<16x1xf32> to vector<16x64xf32>
    %242 = arith.mulf %241, %239 : vector<16x64xf32>
    %cst_101 = arith.constant dense<0.000000e+00> : vector<64xf32>
    %243 = vector.multi_reduction <add>, %242, %cst_101 [0] : vector<16x64xf32> to vector<64xf32>
    %244 = vector.shape_cast %243 : vector<64xf32> to vector<1x64xf32>
    %c2_i32_102 = arith.constant 2 : i32
    %245 = arith.addi %179, %c2_i32_102 : i32
    %246 = arith.index_cast %245 : i32 to index
    %c0_103 = arith.constant 0 : index
    %247 = vector.load %arg19[%246, %c0_103] : memref<8x64xf32, #tpu.memory_space<vmem>>, vector<1x64xf32>
    tpu.vector_store %arg19[%246, %c0_103], %244 {strides = array<i32>} : memref<8x64xf32, #tpu.memory_space<vmem>>, vector<1x64xf32>,
    %248 = vector.extract_strided_slice %182 {offsets = [0, 3], sizes = [16, 1], strides = [1, 1]} : vector<16x8xf32> to vector<16x1xf32>
    %249 = vector.extract_strided_slice %190 {offsets = [3, 0], sizes = [1, 64], strides = [1, 1]} : vector<8x64xf32> to vector<1x64xf32>
    %250 = vector.broadcast %248 : vector<16x1xf32> to vector<16x64xf32>
    %251 = vector.broadcast %249 : vector<1x64xf32> to vector<16x64xf32>
    %252 = arith.mulf %250, %251 : vector<16x64xf32>
    %c3_i32_104 = arith.constant 3 : i32
    %253 = arith.addi %179, %c3_i32_104 : i32
    %254 = arith.index_cast %253 : i32 to index
    %c0_105 = arith.constant 0 : index
    %c0_106 = arith.constant 0 : index
    %255 = vector.load %arg20[%254, %c0_105, %c0_106] : memref<8x16x64xf32, #tpu.memory_space<vmem>>, vector<1x16x64xf32>
    %256 = vector.shape_cast %255 : vector<1x16x64xf32> to vector<16x64xf32>
    %257 = arith.mulf %256, %239 : vector<16x64xf32>
    %258 = arith.addf %257, %252 : vector<16x64xf32>
    %259 = vector.extract_strided_slice %185 {offsets = [0, 3], sizes = [16, 1], strides = [1, 1]} : vector<16x8xf32> to vector<16x1xf32>
    %260 = vector.broadcast %259 : vector<16x1xf32> to vector<16x64xf32>
    %261 = arith.mulf %260, %258 : vector<16x64xf32>
    %cst_107 = arith.constant dense<0.000000e+00> : vector<64xf32>
    %262 = vector.multi_reduction <add>, %261, %cst_107 [0] : vector<16x64xf32> to vector<64xf32>
    %263 = vector.shape_cast %262 : vector<64xf32> to vector<1x64xf32>
    %c3_i32_108 = arith.constant 3 : i32
    %264 = arith.addi %179, %c3_i32_108 : i32
    %265 = arith.index_cast %264 : i32 to index
    %c0_109 = arith.constant 0 : index
    %266 = vector.load %arg19[%265, %c0_109] : memref<8x64xf32, #tpu.memory_space<vmem>>, vector<1x64xf32>
    tpu.vector_store %arg19[%265, %c0_109], %263 {strides = array<i32>} : memref<8x64xf32, #tpu.memory_space<vmem>>, vector<1x64xf32>,
    %267 = vector.extract_strided_slice %182 {offsets = [0, 4], sizes = [16, 1], strides = [1, 1]} : vector<16x8xf32> to vector<16x1xf32>
    %268 = vector.extract_strided_slice %190 {offsets = [4, 0], sizes = [1, 64], strides = [1, 1]} : vector<8x64xf32> to vector<1x64xf32>
    %269 = vector.broadcast %267 : vector<16x1xf32> to vector<16x64xf32>
    %270 = vector.broadcast %268 : vector<1x64xf32> to vector<16x64xf32>
    %271 = arith.mulf %269, %270 : vector<16x64xf32>
    %c4_i32_110 = arith.constant 4 : i32
    %272 = arith.addi %179, %c4_i32_110 : i32
    %273 = arith.index_cast %272 : i32 to index
    %c0_111 = arith.constant 0 : index
    %c0_112 = arith.constant 0 : index
    %274 = vector.load %arg20[%273, %c0_111, %c0_112] : memref<8x16x64xf32, #tpu.memory_space<vmem>>, vector<1x16x64xf32>
    %275 = vector.shape_cast %274 : vector<1x16x64xf32> to vector<16x64xf32>
    %276 = arith.mulf %275, %258 : vector<16x64xf32>
    %277 = arith.addf %276, %271 : vector<16x64xf32>
    %278 = vector.extract_strided_slice %185 {offsets = [0, 4], sizes = [16, 1], strides = [1, 1]} : vector<16x8xf32> to vector<16x1xf32>
    %279 = vector.broadcast %278 : vector<16x1xf32> to vector<16x64xf32>
    %280 = arith.mulf %279, %277 : vector<16x64xf32>
    %cst_113 = arith.constant dense<0.000000e+00> : vector<64xf32>
    %281 = vector.multi_reduction <add>, %280, %cst_113 [0] : vector<16x64xf32> to vector<64xf32>
    %282 = vector.shape_cast %281 : vector<64xf32> to vector<1x64xf32>
    %c4_i32_114 = arith.constant 4 : i32
    %283 = arith.addi %179, %c4_i32_114 : i32
    %284 = arith.index_cast %283 : i32 to index
    %c0_115 = arith.constant 0 : index
    %285 = vector.load %arg19[%284, %c0_115] : memref<8x64xf32, #tpu.memory_space<vmem>>, vector<1x64xf32>
    tpu.vector_store %arg19[%284, %c0_115], %282 {strides = array<i32>} : memref<8x64xf32, #tpu.memory_space<vmem>>, vector<1x64xf32>,
    %286 = vector.extract_strided_slice %182 {offsets = [0, 5], sizes = [16, 1], strides = [1, 1]} : vector<16x8xf32> to vector<16x1xf32>
    %287 = vector.extract_strided_slice %190 {offsets = [5, 0], sizes = [1, 64], strides = [1, 1]} : vector<8x64xf32> to vector<1x64xf32>
    %288 = vector.broadcast %286 : vector<16x1xf32> to vector<16x64xf32>
    %289 = vector.broadcast %287 : vector<1x64xf32> to vector<16x64xf32>
    %290 = arith.mulf %288, %289 : vector<16x64xf32>
    %c5_i32_116 = arith.constant 5 : i32
    %291 = arith.addi %179, %c5_i32_116 : i32
    %292 = arith.index_cast %291 : i32 to index
    %c0_117 = arith.constant 0 : index
    %c0_118 = arith.constant 0 : index
    %293 = vector.load %arg20[%292, %c0_117, %c0_118] : memref<8x16x64xf32, #tpu.memory_space<vmem>>, vector<1x16x64xf32>
    %294 = vector.shape_cast %293 : vector<1x16x64xf32> to vector<16x64xf32>
    %295 = arith.mulf %294, %277 : vector<16x64xf32>
    %296 = arith.addf %295, %290 : vector<16x64xf32>
    %297 = vector.extract_strided_slice %185 {offsets = [0, 5], sizes = [16, 1], strides = [1, 1]} : vector<16x8xf32> to vector<16x1xf32>
    %298 = vector.broadcast %297 : vector<16x1xf32> to vector<16x64xf32>
    %299 = arith.mulf %298, %296 : vector<16x64xf32>
    %cst_119 = arith.constant dense<0.000000e+00> : vector<64xf32>
    %300 = vector.multi_reduction <add>, %299, %cst_119 [0] : vector<16x64xf32> to vector<64xf32>
    %301 = vector.shape_cast %300 : vector<64xf32> to vector<1x64xf32>
    %c5_i32_120 = arith.constant 5 : i32
    %302 = arith.addi %179, %c5_i32_120 : i32
    %303 = arith.index_cast %302 : i32 to index
    %c0_121 = arith.constant 0 : index
    %304 = vector.load %arg19[%303, %c0_121] : memref<8x64xf32, #tpu.memory_space<vmem>>, vector<1x64xf32>
    tpu.vector_store %arg19[%303, %c0_121], %301 {strides = array<i32>} : memref<8x64xf32, #tpu.memory_space<vmem>>, vector<1x64xf32>,
    %305 = vector.extract_strided_slice %182 {offsets = [0, 6], sizes = [16, 1], strides = [1, 1]} : vector<16x8xf32> to vector<16x1xf32>
    %306 = vector.extract_strided_slice %190 {offsets = [6, 0], sizes = [1, 64], strides = [1, 1]} : vector<8x64xf32> to vector<1x64xf32>
    %307 = vector.broadcast %305 : vector<16x1xf32> to vector<16x64xf32>
    %308 = vector.broadcast %306 : vector<1x64xf32> to vector<16x64xf32>
    %309 = arith.mulf %307, %308 : vector<16x64xf32>
    %c6_i32_122 = arith.constant 6 : i32
    %310 = arith.addi %179, %c6_i32_122 : i32
    %311 = arith.index_cast %310 : i32 to index
    %c0_123 = arith.constant 0 : index
    %c0_124 = arith.constant 0 : index
    %312 = vector.load %arg20[%311, %c0_123, %c0_124] : memref<8x16x64xf32, #tpu.memory_space<vmem>>, vector<1x16x64xf32>
    %313 = vector.shape_cast %312 : vector<1x16x64xf32> to vector<16x64xf32>
    %314 = arith.mulf %313, %296 : vector<16x64xf32>
    %315 = arith.addf %314, %309 : vector<16x64xf32>
    %316 = vector.extract_strided_slice %185 {offsets = [0, 6], sizes = [16, 1], strides = [1, 1]} : vector<16x8xf32> to vector<16x1xf32>
    %317 = vector.broadcast %316 : vector<16x1xf32> to vector<16x64xf32>
    %318 = arith.mulf %317, %315 : vector<16x64xf32>
    %cst_125 = arith.constant dense<0.000000e+00> : vector<64xf32>
    %319 = vector.multi_reduction <add>, %318, %cst_125 [0] : vector<16x64xf32> to vector<64xf32>
    %320 = vector.shape_cast %319 : vector<64xf32> to vector<1x64xf32>
    %c6_i32_126 = arith.constant 6 : i32
    %321 = arith.addi %179, %c6_i32_126 : i32
    %322 = arith.index_cast %321 : i32 to index
    %c0_127 = arith.constant 0 : index
    %323 = vector.load %arg19[%322, %c0_127] : memref<8x64xf32, #tpu.memory_space<vmem>>, vector<1x64xf32>
    tpu.vector_store %arg19[%322, %c0_127], %320 {strides = array<i32>} : memref<8x64xf32, #tpu.memory_space<vmem>>, vector<1x64xf32>,
    %324 = vector.extract_strided_slice %182 {offsets = [0, 7], sizes = [16, 1], strides = [1, 1]} : vector<16x8xf32> to vector<16x1xf32>
    %325 = vector.extract_strided_slice %190 {offsets = [7, 0], sizes = [1, 64], strides = [1, 1]} : vector<8x64xf32> to vector<1x64xf32>
    %326 = vector.broadcast %324 : vector<16x1xf32> to vector<16x64xf32>
    %327 = vector.broadcast %325 : vector<1x64xf32> to vector<16x64xf32>
    %328 = arith.mulf %326, %327 : vector<16x64xf32>
    %c7_i32_128 = arith.constant 7 : i32
    %329 = arith.addi %179, %c7_i32_128 : i32
    %330 = arith.index_cast %329 : i32 to index
    %c0_129 = arith.constant 0 : index
    %c0_130 = arith.constant 0 : index
    %331 = vector.load %arg20[%330, %c0_129, %c0_130] : memref<8x16x64xf32, #tpu.memory_space<vmem>>, vector<1x16x64xf32>
    %332 = vector.shape_cast %331 : vector<1x16x64xf32> to vector<16x64xf32>
    %333 = arith.mulf %332, %315 : vector<16x64xf32>
    %334 = arith.addf %333, %328 : vector<16x64xf32>
    %335 = vector.extract_strided_slice %185 {offsets = [0, 7], sizes = [16, 1], strides = [1, 1]} : vector<16x8xf32> to vector<16x1xf32>
    %336 = vector.broadcast %335 : vector<16x1xf32> to vector<16x64xf32>
    %337 = arith.mulf %336, %334 : vector<16x64xf32>
    %cst_131 = arith.constant dense<0.000000e+00> : vector<64xf32>
    %338 = vector.multi_reduction <add>, %337, %cst_131 [0] : vector<16x64xf32> to vector<64xf32>
    %339 = vector.shape_cast %338 : vector<64xf32> to vector<1x64xf32>
    %c7_i32_132 = arith.constant 7 : i32
    %340 = arith.addi %179, %c7_i32_132 : i32
    %341 = arith.index_cast %340 : i32 to index
    %c0_133 = arith.constant 0 : index
    %342 = vector.load %arg19[%341, %c0_133] : memref<8x64xf32, #tpu.memory_space<vmem>>, vector<1x64xf32>
    tpu.vector_store %arg19[%341, %c0_133], %339 {strides = array<i32>} : memref<8x64xf32, #tpu.memory_space<vmem>>, vector<1x64xf32>,
    %c1_i32_134 = arith.constant 1 : i32
    %c0_135 = arith.constant 0 : index
    %c0_136 = arith.constant 0 : index
    %343 = vector.load %arg19[%c0_135, %c0_136] : memref<8x64xf32, #tpu.memory_space<vmem>>, vector<8x64xf32>
    %c0_137 = arith.constant 0 : index
    %c0_138 = arith.constant 0 : index
    %c0_139 = arith.constant 0 : index
    %344 = vector.load %arg11[%c0_137, %c0_138, %c0_139] : memref<1x1x64xf32, #tpu.memory_space<vmem>>, vector<1x1x64xf32>
    %345 = vector.shape_cast %344 : vector<1x1x64xf32> to vector<1x64xf32>
    %346 = vector.broadcast %345 : vector<1x64xf32> to vector<8x64xf32>
    %347 = arith.mulf %346, %74 : vector<8x64xf32>
    %348 = arith.addf %343, %347 : vector<8x64xf32>
    %cst_140 = arith.constant 0.000000e+00 : f32
    %349 = vector.broadcast %cst_140 : f32 to vector<8x64xf32>
    %350 = arith.subf %349, %23 : vector<8x64xf32>
    %351 = math.exp %350 : vector<8x64xf32>
    %cst_141 = arith.constant 1.000000e+00 : f32
    %352 = vector.broadcast %cst_141 : f32 to vector<8x64xf32>
    %353 = arith.addf %352, %351 : vector<8x64xf32>
    %cst_142 = arith.constant 1.000000e+00 : f32
    %354 = vector.broadcast %cst_142 : f32 to vector<8x64xf32>
    %355 = arith.divf %354, %353 : vector<8x64xf32>
    %356 = arith.mulf %23, %355 : vector<8x64xf32>
    %357 = arith.mulf %348, %356 : vector<8x64xf32>
    %358 = arith.truncf %357 : vector<8x64xf32> to vector<8x64xbf16>
    %c0_143 = arith.constant 0 : index
    %c0_144 = arith.constant 0 : index
    %c0_145 = arith.constant 0 : index
    %359 = vector.load %arg12[%c0_143, %c0_144, %c0_145] : memref<1x64x32xbf16, #tpu.memory_space<vmem>>, vector<1x64x32xbf16>
    %360 = vector.shape_cast %359 : vector<1x64x32xbf16> to vector<64x32xbf16>
    %cst_146 = arith.constant dense<0.000000e+00> : vector<8x32xf32>
    %361 = tpu.matmul %358, %360, %cst_146 {dimension_numbers = #tpu.dot_dimension_numbers<[1], [0], [0], [1], [0, 0, 1, 1], [], []>} : vector<8x64xbf16>, vector<64x32xbf16>, vector<8x32xf32> -> vector<8x32xf32>
    %362 = arith.addf %3, %361 : vector<8x32xf32>
    %c0_147 = arith.constant 0 : index
    %c0_148 = arith.constant 0 : index
    %363 = vector.load %arg14[%c0_147, %c0_148] : memref<8x32xf32, #tpu.memory_space<vmem>>, vector<8x32xf32>
    tpu.vector_store %arg14[%c0_147, %c0_148], %362 {strides = array<i32>} : memref<8x32xf32, #tpu.memory_space<vmem>>, vector<8x32xf32>,
    %c1_i32_149 = arith.constant 1 : i32
    %364 = arith.cmpi eq, %arg1, %c1_i32_149 : i32
    %365 = arith.extui %364 : i1 to i32
    %c0_i32_150 = arith.constant 0 : i32
    %366 = arith.cmpi ne, %365, %c0_i32_150 : i32
    scf.if %366 {
      %c0_151 = arith.constant 0 : index
      %c0_152 = arith.constant 0 : index
      %367 = vector.load %arg14[%c0_151, %c0_152] : memref<8x32xf32, #tpu.memory_space<vmem>>, vector<8x32xf32>
      %368 = arith.truncf %367 : vector<8x32xf32> to vector<8x32xbf16>
      %c0_153 = arith.constant 0 : index
      %c0_154 = arith.constant 0 : index
      %c0_155 = arith.constant 0 : index
      %369 = vector.load %arg13[%c0_153, %c0_154, %c0_155] : memref<1x8x32xbf16, #tpu.memory_space<vmem>>, vector<1x8x32xbf16>
      %370 = vector.shape_cast %369 : vector<1x8x32xbf16> to vector<8x32xbf16>
      %371 = vector.shape_cast %368 : vector<8x32xbf16> to vector<1x8x32xbf16>
      tpu.vector_store %arg13[%c0_153, %c0_154, %c0_155], %371 {strides = array<i32>} : memref<1x8x32xbf16, #tpu.memory_space<vmem>>, vector<1x8x32xbf16>,
    } else {
    }
    return
  }
  func.func @transform_0(%arg0: i32, %arg1: i32) -> (i32, i32, i32) {
    %c0_i32 = arith.constant 0 : i32
    %c0_i32_0 = arith.constant 0 : i32
    %c0_i32_1 = arith.constant 0 : i32
    return %arg0, %c0_i32, %c0_i32_0 : i32, i32, i32
  }
  func.func @transform_1(%arg0: i32, %arg1: i32) -> (i32, i32, i32) {
    %c0_i32 = arith.constant 0 : i32
    %c0_i32_0 = arith.constant 0 : i32
    %c0_i32_1 = arith.constant 0 : i32
    return %arg1, %c0_i32, %c0_i32_0 : i32, i32, i32
  }
  func.func @transform_2(%arg0: i32, %arg1: i32) -> (i32, i32, i32) {
    %c0_i32 = arith.constant 0 : i32
    %c0_i32_0 = arith.constant 0 : i32
    %c0_i32_1 = arith.constant 0 : i32
    return %arg1, %c0_i32, %c0_i32_0 : i32, i32, i32
  }
  func.func @transform_3(%arg0: i32, %arg1: i32) -> (i32, i32, i32) {
    %c0_i32 = arith.constant 0 : i32
    %c0_i32_0 = arith.constant 0 : i32
    %c0_i32_1 = arith.constant 0 : i32
    return %arg1, %c0_i32, %c0_i32_0 : i32, i32, i32
  }
  func.func @transform_4(%arg0: i32, %arg1: i32) -> (i32, i32, i32) {
    %c0_i32 = arith.constant 0 : i32
    %c0_i32_0 = arith.constant 0 : i32
    %c0_i32_1 = arith.constant 0 : i32
    return %arg1, %c0_i32, %c0_i32_0 : i32, i32, i32
  }
  func.func @transform_5(%arg0: i32, %arg1: i32) -> (i32, i32, i32) {
    %c0_i32 = arith.constant 0 : i32
    %c0_i32_0 = arith.constant 0 : i32
    %c0_i32_1 = arith.constant 0 : i32
    return %arg1, %c0_i32, %c0_i32_0 : i32, i32, i32
  }
  func.func @transform_6(%arg0: i32, %arg1: i32) -> (i32, i32, i32) {
    %c0_i32 = arith.constant 0 : i32
    %c0_i32_0 = arith.constant 0 : i32
    %c0_i32_1 = arith.constant 0 : i32
    return %arg1, %c0_i32, %c0_i32_0 : i32, i32, i32
  }
  func.func @transform_7(%arg0: i32, %arg1: i32) -> (i32, i32, i32) {
    %c0_i32 = arith.constant 0 : i32
    %c0_i32_0 = arith.constant 0 : i32
    %c0_i32_1 = arith.constant 0 : i32
    return %arg1, %c0_i32, %c0_i32_0 : i32, i32, i32
  }
  func.func @transform_8(%arg0: i32, %arg1: i32) -> (i32, i32, i32) {
    %c0_i32 = arith.constant 0 : i32
    %c0_i32_0 = arith.constant 0 : i32
    %c0_i32_1 = arith.constant 0 : i32
    return %arg1, %c0_i32, %c0_i32_0 : i32, i32, i32
  }
  func.func @transform_9(%arg0: i32, %arg1: i32) -> (i32, i32, i32) {
    %c0_i32 = arith.constant 0 : i32
    %c0_i32_0 = arith.constant 0 : i32
    %c0_i32_1 = arith.constant 0 : i32
    return %arg1, %c0_i32, %c0_i32_0 : i32, i32, i32
  }
  func.func @transform_10(%arg0: i32, %arg1: i32) -> (i32, i32, i32) {
    %c0_i32 = arith.constant 0 : i32
    %c0_i32_0 = arith.constant 0 : i32
    %c0_i32_1 = arith.constant 0 : i32
    return %arg1, %c0_i32, %c0_i32_0 : i32, i32, i32
  }
  func.func @transform_11(%arg0: i32, %arg1: i32) -> (i32, i32, i32) {
    %c0_i32 = arith.constant 0 : i32
    %c0_i32_0 = arith.constant 0 : i32
    %c0_i32_1 = arith.constant 0 : i32
    return %arg0, %c0_i32, %c0_i32_0 : i32, i32, i32
  }
}

</mosaic_0001>

<llo_original>
// kernel: mambabyte_lm_forward.5
$region0: #{mambabyte_lm_forward.5}
  #allocation0 [shape = 'u32[]', space=smem, size = 0x4, offset = 0x4, fixed_abs, tag = 'smem constant byte address 0x4 - core index']
  #allocation1 [shape = 'u32[72,128]{1,0:T(1,128)}', space=vmem, size = 0x9000, scoped, tag = 'internal scratch']
  #allocation2 [shape = 'f32[16,256]{1,0:T(8,128)}', space=vmem, size = 0x4000, scoped, tag = 'scratch operand']
  %s0 = inlined_call_operand.vmem [shape: bf16[16,32], index: 0, kind: input, shape index: {}]
  %s1 = inlined_call_operand.vmem [shape: bf16[32,256], index: 1, kind: input, shape index: {}]
  %s2 = inlined_call_operand.hbm [shape: f32[16,256], index: 2, kind: output, shape index: {}]
  %s3 = sld [smem:[#allocation0]]
  $region26: #{mambabyte_lm_forward.5} parent=0
    _
  %s5 = ssub.s32 1, %s3
  %s6 = scalar_select 0, %s5, %s3
  $region1: #{mambabyte_lm_forward.5} parent=0
    #allocation3 [shape = 'u8[16384]{0}', space=vmem, size = 0x4000, scoped, tag = 'output window, operand 0, single buffered']
    #allocation4 [shape = 's32[1]{0}', space=sflag, size = 0x4, scoped, tag = 'scoped memory for mambabyte_lm_forward.5']
    %7 = vsyncpa [#allocation4], 0
    // Predicated region
    $region2: #{mambabyte_lm_forward.5} parent=1 // pred_check
      _
    $region3: #{mambabyte_lm_forward.5} parent=1 // pred_check_branch
      %9 = sbr.rel (0) target = $region5
    $region4: #{mambabyte_lm_forward.5} parent=1 // pred_region
      _
    $region5: #{mambabyte_lm_forward.5} parent=1 // pred_fallthru
      _
    // Predicated region
    $region6: #{mambabyte_lm_forward.5} parent=1 // pred_check
      _
    $region7: #{mambabyte_lm_forward.5} parent=1 // pred_check_branch
      %11 = sbr.rel (0) target = $region9
    $region8: #{mambabyte_lm_forward.5} parent=1 // pred_region
      _
    $region9: #{mambabyte_lm_forward.5} parent=1 // pred_fallthru
      _
    %p13 = scmp.eq.s32.totalorder 0, 0
    // Predicated region
    $region10: #{mambabyte_lm_forward.5} parent=1 // pred_check
      %p14 = pneg %p13
    $region11: #{mambabyte_lm_forward.5} parent=1 // pred_check_branch
      %16 = sbr.rel (%p14) target = $region13
    $region12: #{mambabyte_lm_forward.5} parent=1 // pred_region
      %17 = vst [vmem:[#allocation2] sm:$0xff] 0.0
      %18 = vst [vmem:[#allocation2 + $0x8] sm:$0xff] 0.0
      %19 = vst [vmem:[#allocation2 + $0x10] sm:$0xff] 0.0
      %20 = vst [vmem:[#allocation2 + $0x18] sm:$0xff] 0.0
    $region13: #{mambabyte_lm_forward.5} parent=1 // pred_fallthru
      _
    %v21 = vld [vmem:[#allocation2] sm:$0xff]
    %v22 = vld [vmem:[#allocation2 + $0x8] sm:$0xff]
    %v23 = vld [vmem:[#allocation2 + $0x10] sm:$0xff]
    %v24 = vld [vmem:[#allocation2 + $0x18] sm:$0xff]
    %v25 = vld [vmem:[%s0] sm:$0xf]
    %v26 = vld [vmem:[%s0 + $0x4] sm:$0xf]
    %v27 = vld [vmem:[%s1] sm:$0xff]
    %v28 = vld [vmem:[%s1 + $0x8] sm:$0xff]
    %v29 = vld [vmem:[%s1 + $0x10] sm:$0xff]
    %v30 = vld [vmem:[%s1 + $0x18] sm:$0xff]
    %v33 = vunpack.c.l.b16 %v25
    %v34 = vunpack.c.l.b16 %v26
    %v35 = vpack.c.b16 %v34, %v33
    %v40 = vunpack.c.l.b16 %v27
    %v41 = vunpack.c.h.b16 %v27
    %v42 = vunpack.c.l.b16 %v28
    %v43 = vunpack.c.h.b16 %v28
    %v44 = vunpack.c.l.b16 %v29
    %v45 = vunpack.c.h.b16 %v29
    %v46 = vunpack.c.l.b16 %v30
    %v47 = vunpack.c.h.b16 %v30
    %v48 = vpack.c.b16 %v42, %v40
    %v49 = vpack.c.b16 %v43, %v41
    %v50 = vpack.c.b16 %v46, %v44
    %v51 = vpack.c.b16 %v47, %v45
    %vm56 = vcmask 261120
    %v58 = vsel %vm56, %v35, 0
    %60 = vmatpush.bf16.msra.mxu0 0
    %61 = vmatpush.bf16.msra.mxu0 0
    %62 = vmatpush.bf16.msra.mxu0 0
    %63 = vmatpush.bf16.msra.mxu0 0
    %64 = vmatpush.bf16.msra.mxu0 0
    %65 = vmatpush.bf16.msra.mxu0 0
    %66 = vmatpush.bf16.msra.mxu0 %v50
    %67 = vmatpush.bf16.msra.mxu0 %v48
    %68 = vmatmul.bf16.gmra.mxu0 %v58
    %v69 = vpop.f32.mrf.mxu0
    %v70 = vadd.f32 0.0, %v69
    %v71 = vpop.f32.mrf.mxu0
    %v72 = vadd.f32 0.0, %v71
    %73 = vdwg.mxu0
    %74 = vmatpush.bf16.msra.mxu0 0
    %75 = vmatpush.bf16.msra.mxu0 0
    %76 = vmatpush.bf16.msra.mxu0 0
    %77 = vmatpush.bf16.msra.mxu0 0
    %78 = vmatpush.bf16.msra.mxu0 0
    %79 = vmatpush.bf16.msra.mxu0 0
    %80 = vmatpush.bf16.msra.mxu0 %v51
    %81 = vmatpush.bf16.msra.mxu0 %v49
    %82 = vmatmul.bf16.gmra.mxu0 %v58
    %v83 = vpop.f32.mrf.mxu0
    %v84 = vadd.f32 0.0, %v83
    %v85 = vpop.f32.mrf.mxu0
    %v86 = vadd.f32 0.0, %v85
    %87 = vdwg.mxu0
    %v88 = vadd.f32 %v21, %v70
    %v89 = vadd.f32 %v22, %v84
    %v90 = vadd.f32 %v23, %v72
    %v91 = vadd.f32 %v24, %v86
    %92 = vst [vmem:[#allocation2] sm:$0xff] %v88
    %93 = vst [vmem:[#allocation2 + $0x8] sm:$0xff] %v89
    %94 = vst [vmem:[#allocation2 + $0x10] sm:$0xff] %v90
    %95 = vst [vmem:[#allocation2 + $0x18] sm:$0xff] %v91
    // Predicated region
    $region14: #{mambabyte_lm_forward.5} parent=1 // pred_check
      %p96 = pneg %p13
    $region15: #{mambabyte_lm_forward.5} parent=1 // pred_check_branch
      %98 = sbr.rel (%p96) target = $region17
    $region16: #{mambabyte_lm_forward.5} parent=1 // pred_region
      %v99 = vld [vmem:[#allocation2] sm:$0xff]
      %v100 = vld [vmem:[#allocation2 + $0x8] sm:$0xff]
      %v101 = vld [vmem:[#allocation2 + $0x10] sm:$0xff]
      %v102 = vld [vmem:[#allocation2 + $0x18] sm:$0xff]
      %103 = vst [vmem:[#allocation3] sm:$0xff] %v99
      %104 = vst [vmem:[#allocation3 + $0x8] sm:$0xff] %v100
      %105 = vst [vmem:[#allocation3 + $0x10] sm:$0xff] %v101
      %106 = vst [vmem:[#allocation3 + $0x18] sm:$0xff] %v102
    $region17: #{mambabyte_lm_forward.5} parent=1 // pred_fallthru
      _
    // Predicated region
    $region18: #{mambabyte_lm_forward.5} parent=1 // pred_check
      _
    $region19: #{mambabyte_lm_forward.5} parent=1 // pred_check_branch
      %108 = sbr.rel (0) target = $region21
    $region20: #{mambabyte_lm_forward.5} parent=1 // pred_region
      %110 = vsyncadd [#allocation4], 0
      %s111 = sshll.u32 [#allocation3], 4
      %s112 = int_to_ptr.vmem [resolvable:$true] %s111
      %s113 = sshll.u32 %s2, 4
      %s114 = int_to_ptr.hbm [resolvable:$true] %s113
      %119 = dma.vmem_to_hbm [thread:$0]  %s112, 512, %s114, [#allocation4], 256, 256, 16
    $region21: #{mambabyte_lm_forward.5} parent=1 // pred_fallthru
      _
    // Predicated region
    $region22: #{mambabyte_lm_forward.5} parent=1 // pred_check
      _
    $region23: #{mambabyte_lm_forward.5} parent=1 // pred_check_branch
      %121 = sbr.rel (0) target = $region25
    $region24: #{mambabyte_lm_forward.5} parent=1 // pred_region
      %123 = dma.done [#allocation4], 512
    $region25: #{mambabyte_lm_forward.5} parent=1 // pred_fallthru
      _
    %124 = vsyncpa [#allocation4], 1

// kernel: mambabyte_lm_forward.4
$region0: #{mambabyte_lm_forward.4}
  #allocation0 [shape = 'u32[]', space=smem, size = 0x4, offset = 0x4, fixed_abs, tag = 'smem constant byte address 0x4 - core index']
  #allocation1 [shape = 'u32[72,128]{1,0:T(1,128)}', space=vmem, size = 0x9000, scoped, tag = 'internal scratch']
  %s0 = inlined_call_operand.vmem [shape: bf16[16,32], index: 0, kind: input, shape index: {}]
  %s1 = inlined_call_operand.vmem [shape: f32[1,32], index: 1, kind: input, shape index: {}]
  %s2 = inlined_call_operand.vmem [shape: bf16[16,32], index: 2, kind: output, shape index: {}]
  %s3 = sld [smem:[#allocation0]]
  $region18: #{mambabyte_lm_forward.4} parent=0
    _
  %s5 = ssub.s32 1, %s3
  %s6 = scalar_select 0, %s5, %s3
  // Predicated region
  $region2: #{mambabyte_lm_forward.4} parent=0 // pred_check
    _
  $region3: #{mambabyte_lm_forward.4} parent=0 // pred_check_branch
    %8 = sbr.rel (0) target = $region5
  $region4: #{mambabyte_lm_forward.4} parent=0 // pred_region
    _
  $region5: #{mambabyte_lm_forward.4} parent=0 // pred_fallthru
    _
  // Predicated region
  $region6: #{mambabyte_lm_forward.4} parent=0 // pred_check
    _
  $region7: #{mambabyte_lm_forward.4} parent=0 // pred_check_branch
    %10 = sbr.rel (0) target = $region9
  $region8: #{mambabyte_lm_forward.4} parent=0 // pred_region
    _
  $region9: #{mambabyte_lm_forward.4} parent=0 // pred_fallthru
    _
  %v11 = vld [vmem:[%s0] sm:$0xf]
  %v12 = vld [vmem:[%s0 + $0x4] sm:$0xf]
  %v13 = vunpack.c.l.bf16 %v11
  %v14 = vunpack.c.l.bf16 %v12
  %v15 = vmul.f32 %v13, %v13
  %v16 = vmul.f32 %v14, %v14
  %vm17 = vcmask 261120
  %v18 = vsel %vm17, %v15, 0.0
  %19 = vadd.xlane.f32.xlu0 %v18
  %v20 = vpop.xlane.xlu0 %19
  %v21 = vsel %vm17, %v16, 0.0
  %22 = vadd.xlane.f32.xlu0 %v21
  %v23 = vpop.xlane.xlu0 %22
  %v24 = vrcp.pop 32.0
  %v25 = vmul.f32 32.0, %v24
  %v26 = vsub.f32 1.0, %v25
  %v27 = vmul.f32 %v24, %v26
  %v28 = vadd.f32 %v24, %v27
  %vm29 = vweird.f32 %v24
  %v30 = vsel %vm29, %v24, %v28
  %v31 = vmul.f32 %v20, %v30
  %v32 = vmul.f32 %v23, %v30
  %v33 = vadd.f32 %v31, 1e-05
  %v34 = vadd.f32 %v32, 1e-05
  %v35 = vrsqrt.pop %v33
  %v36 = vmul.f32 %v35, %v33
  %v37 = vmul.f32 %v36, %v35
  %v38 = vmul.f32 0.5, %v37
  %v39 = vsub.f32 1.5, %v38
  %v40 = vmul.f32 %v35, %v39
  %vm41 = vweird.f32 %v33
  %vm42 = vweird.f32 %v35
  %vm43 = vmor %vm41, %vm42
  %v44 = vsel %vm43, %v35, %v40
  %v45 = vrsqrt.pop %v34
  %v46 = vmul.f32 %v45, %v34
  %v47 = vmul.f32 %v46, %v45
  %v48 = vmul.f32 0.5, %v47
  %v49 = vsub.f32 1.5, %v48
  %v50 = vmul.f32 %v45, %v49
  %vm51 = vweird.f32 %v34
  %vm52 = vweird.f32 %v45
  %vm53 = vmor %vm51, %vm52
  %v54 = vsel %vm53, %v45, %v50
  %v55 = vmul.f32 %v13, %v44
  %v56 = vmul.f32 %v14, %v54
  %v57 = vld [vmem:[%s1] sm:$0x1]
  %v59 = vperm.slane %v57, 0
  %v61 = vmul.f32 %v55, %v59
  %v62 = vmul.f32 %v56, %v59
  %v63 = vpack.c.bf16 %v61, %v61
  %v64 = vpack.c.bf16 %v62, %v62
  %vm65 = vcmask 257024
  %66 = vst.msk [vmem:[%s2] sm:$0xf] %vm65, %v63
  %67 = vst.msk [vmem:[%s2 + $0x4] sm:$0xf] %vm65, %v64
  // Predicated region
  $region10: #{mambabyte_lm_forward.4} parent=0 // pred_check
    _
  $region11: #{mambabyte_lm_forward.4} parent=0 // pred_check_branch
    %69 = sbr.rel (0) target = $region13
  $region12: #{mambabyte_lm_forward.4} parent=0 // pred_region
    _
  $region13: #{mambabyte_lm_forward.4} parent=0 // pred_fallthru
    _
  // Predicated region
  $region14: #{mambabyte_lm_forward.4} parent=0 // pred_check
    _
  $region15: #{mambabyte_lm_forward.4} parent=0 // pred_check_branch
    %71 = sbr.rel (0) target = $region17
  $region16: #{mambabyte_lm_forward.4} parent=0 // pred_region
    _
  $region17: #{mambabyte_lm_forward.4} parent=0 // pred_fallthru
    _

// kernel: mambabyte_lm_forward.3
$region0: #{mambabyte_lm_forward.3}
  #allocation0 [shape = 'u32[]', space=smem, size = 0x4, offset = 0x4, fixed_abs, tag = 'smem constant byte address 0x4 - core index']
  #allocation1 [shape = 'u32[72,128]{1,0:T(1,128)}', space=vmem, size = 0x9000, scoped, tag = 'internal scratch']
  #allocation2 [shape = 'f32[8,32]{1,0:T(8,128)}', space=vmem, size = 0x1000, scoped, tag = 'scratch operand']
  #allocation3 [shape = 'f32[8,64]{1,0:T(8,128)}', space=vmem, size = 0x1000, scoped, tag = 'scratch operand']
  #allocation4 [shape = 'f32[8,64]{1,0:T(8,128)}', space=vmem, size = 0x1000, scoped, tag = 'scratch operand']
  #allocation5 [shape = 'f32[8,16]{1,0:T(8,128)}', space=vmem, size = 0x1000, scoped, tag = 'scratch operand']
  #allocation6 [shape = 'f32[8,16]{1,0:T(8,128)}', space=vmem, size = 0x1000, scoped, tag = 'scratch operand']
  #allocation7 [shape = 'f32[8,64]{1,0:T(8,128)}', space=vmem, size = 0x1000, scoped, tag = 'scratch operand']
  #allocation8 [shape = 'f32[8,16,64]{2,1,0:T(8,128)}', space=vmem, size = 0x10000, scoped, tag = 'scratch operand']
  %s0 = inlined_call_operand.vmem [shape: f32[2,8,32], index: 0, kind: input, shape index: {}]
  %s1 = inlined_call_operand.vmem [shape: f32[2,1,32], index: 1, kind: input, shape index: {}]
  %s2 = inlined_call_operand.vmem [shape: bf16[2,32,128], index: 2, kind: input, shape index: {}]
  %s3 = inlined_call_operand.vmem [shape: f32[2,4,64], index: 3, kind: input, shape index: {}]
  %s4 = inlined_call_operand.vmem [shape: f32[2,1,64], index: 4, kind: input, shape index: {}]
  %s5 = inlined_call_operand.vmem [shape: bf16[2,64,34], index: 5, kind: input, shape index: {}]
  %s6 = inlined_call_operand.vmem [shape: bf16[2,2,64], index: 6, kind: input, shape index: {}]
  %s7 = inlined_call_operand.vmem [shape: f32[2,1,64], index: 7, kind: input, shape index: {}]
  %s8 = inlined_call_operand.vmem [shape: f32[2,16,64], index: 8, kind: input, shape index: {}]
  %s9 = inlined_call_operand.vmem [shape: f32[2,1,64], index: 9, kind: input, shape index: {}]
  %s10 = inlined_call_operand.vmem [shape: bf16[2,64,32], index: 10, kind: input, shape index: {}]
  %s11 = inlined_call_operand.vmem [shape: bf16[2,8,32], index: 11, kind: output, shape index: {}]
  %s12 = sld [smem:[#allocation0]]
  $region85: #{mambabyte_lm_forward.3} parent=0
    _
  %s14 = ssub.s32 1, %s12
  %s15 = scalar_select 0, %s14, %s12
  loop: start=0, step=1, limit=6
  $region2: #{mambabyte_lm_forward.3} parent=0 // loop_pre_header
    _
  $region3: #{mambabyte_lm_forward.3} parent=0 // loop_header
    %s17 = sphi 0, %s21
    %p18 = scmp.ge.s32.totalorder %s17, 6
    %s24 = sphi 0, %s36
    %s25 = sphi 0, %s32
    %s26 = sphi 0, %s24
    %s27 = sphi 0, %s25
    %s28 = sphi 0, %s26
    %s29 = sphi 0, %s27
    %s39 = sphi 0, %s41
    %s42 = sphi 0, %s39
    %s43 = sphi 0, %s42
    %s59 = sphi 0, %s43
    %s65 = sphi 0, %s67
    %s68 = sphi 0, %s65
    %s69 = sphi 0, %s68
    %s85 = sphi 0, %s69
    %s91 = sphi 0, %s93
    %s94 = sphi 0, %s91
    %s95 = sphi 0, %s94
    %s111 = sphi 0, %s95
    %s117 = sphi 0, %s119
    %s120 = sphi 0, %s117
    %s121 = sphi 0, %s120
    %s137 = sphi 0, %s121
    %s143 = sphi 0, %s145
    %s146 = sphi 0, %s143
    %s147 = sphi 0, %s146
    %s163 = sphi 0, %s147
    %s169 = sphi 0, %s171
    %s172 = sphi 0, %s169
    %s173 = sphi 0, %s172
    %s189 = sphi 0, %s173
    %s195 = sphi 0, %s197
    %s198 = sphi 0, %s195
    %s199 = sphi 0, %s198
    %s215 = sphi 0, %s199
    %s221 = sphi 0, %s223
    %s224 = sphi 0, %s221
    %s225 = sphi 0, %s224
    %s241 = sphi 0, %s225
    %s247 = sphi 0, %s249
    %s250 = sphi 0, %s247
    %s251 = sphi 0, %s250
    %s267 = sphi 0, %s251
    %s273 = sphi 0, %s275
    %s276 = sphi 0, %s273
    %s277 = sphi 0, %s276
    %s293 = sphi 0, %s277
    %s299 = sphi 0, %s301
    %s302 = sphi 0, %s299
    %s303 = sphi 0, %s302
    %s319 = sphi 0, %s303
    %s325 = sphi 0, %s327
    %s328 = sphi 0, %s325
    %s329 = sphi 0, %s328
    %s345 = sphi 0, %s329
  $region4: #{mambabyte_lm_forward.3} parent=0 // loop_header_branch
    %20 = sbr.rel (%p18) target = $region8
  $region5: #{mambabyte_lm_forward.3} parent=0 // loop_body
    %s22 = ssub.s32 %s17, 1
    %s23 = ssub.s32 %s17, 2
    %s30 = sadd.s32 1, %s25
    %p31 = scmp.ge.s32.totalorder %s30, 2
    %s32 = scalar_select %p31, 0, %s30
    %s33 = sadd.s32 1, %s24
    %s34 = scalar_select %p31, %s33, %s24
    %p35 = scmp.ge.s32.totalorder %s34, 2
    %s36 = scalar_select %p35, 0, %s34
    %s37 = ssub.s32 %s24, %s36
    %p38 = scmp.eq.s32.totalorder %s37, 0
    %s40 = sadd.s32 %s39, 1
    %s41 = scalar_select %p38, %s39, %s40
    %p44 = pneg %p38
    %p45 = scmp.eq.s32.totalorder %s17, 3
    %p46 = por %p44, %p45
    %p47 = scmp.ne.s32.totalorder %s39, %s42
    %p48 = scmp.eq.s32.totalorder %s17, 0
    %p49 = por %p47, %p48
    %p50 = scmp.ne.s32.totalorder %s39, %s42
    %p51 = scmp.eq.s32.totalorder %s22, 3
    %p52 = por %p50, %p51
    %p53 = scmp.ne.s32.totalorder %s42, %s43
    %p54 = scmp.eq.s32.totalorder %s22, 0
    %p55 = por %p53, %p54
    %p56 = scmp.ne.s32.totalorder %s42, %s43
    %p57 = scmp.eq.s32.totalorder %s23, 3
    %p58 = por %p56, %p57
    %p60 = scmp.ne.s32.totalorder %s43, %s59
    %p61 = scmp.eq.s32.totalorder %s23, 0
    %p62 = por %p60, %p61
    %s63 = ssub.s32 %s25, %s32
    %p64 = scmp.eq.s32.totalorder %s63, 0
    %s66 = sadd.s32 %s65, 1
    %s67 = scalar_select %p64, %s65, %s66
    %p70 = pneg %p64
    %p71 = scmp.eq.s32.totalorder %s17, 3
    %p72 = por %p70, %p71
    %p73 = scmp.ne.s32.totalorder %s65, %s68
    %p74 = scmp.eq.s32.totalorder %s17, 0
    %p75 = por %p73, %p74
    %p76 = scmp.ne.s32.totalorder %s65, %s68
    %p77 = scmp.eq.s32.totalorder %s22, 3
    %p78 = por %p76, %p77
    %p79 = scmp.ne.s32.totalorder %s68, %s69
    %p80 = scmp.eq.s32.totalorder %s22, 0
    %p81 = por %p79, %p80
    %p82 = scmp.ne.s32.totalorder %s68, %s69
    %p83 = scmp.eq.s32.totalorder %s23, 3
    %p84 = por %p82, %p83
    %p86 = scmp.ne.s32.totalorder %s69, %s85
    %p87 = scmp.eq.s32.totalorder %s23, 0
    %p88 = por %p86, %p87
    %s89 = ssub.s32 %s25, %s32
    %p90 = scmp.eq.s32.totalorder %s89, 0
    %s92 = sadd.s32 %s91, 1
    %s93 = scalar_select %p90, %s91, %s92
    %p96 = pneg %p90
    %p97 = scmp.eq.s32.totalorder %s17, 3
    %p98 = por %p96, %p97
    %p99 = scmp.ne.s32.totalorder %s91, %s94
    %p100 = scmp.eq.s32.totalorder %s17, 0
    %p101 = por %p99, %p100
    %p102 = scmp.ne.s32.totalorder %s91, %s94
    %p103 = scmp.eq.s32.totalorder %s22, 3
    %p104 = por %p102, %p103
    %p105 = scmp.ne.s32.totalorder %s94, %s95
    %p106 = scmp.eq.s32.totalorder %s22, 0
    %p107 = por %p105, %p106
    %p108 = scmp.ne.s32.totalorder %s94, %s95
    %p109 = scmp.eq.s32.totalorder %s23, 3
    %p110 = por %p108, %p109
    %p112 = scmp.ne.s32.totalorder %s95, %s111
    %p113 = scmp.eq.s32.totalorder %s23, 0
    %p114 = por %p112, %p113
    %s115 = ssub.s32 %s25, %s32
    %p116 = scmp.eq.s32.totalorder %s115, 0
    %s118 = sadd.s32 %s117, 1
    %s119 = scalar_select %p116, %s117, %s118
    %p122 = pneg %p116
    %p123 = scmp.eq.s32.totalorder %s17, 3
    %p124 = por %p122, %p123
    %p125 = scmp.ne.s32.totalorder %s117, %s120
    %p126 = scmp.eq.s32.totalorder %s17, 0
    %p127 = por %p125, %p126
    %p128 = scmp.ne.s32.totalorder %s117, %s120
    %p129 = scmp.eq.s32.totalorder %s22, 3
    %p130 = por %p128, %p129
    %p131 = scmp.ne.s32.totalorder %s120, %s121
    %p132 = scmp.eq.s32.totalorder %s22, 0
    %p133 = por %p131, %p132
    %p134 = scmp.ne.s32.totalorder %s120, %s121
    %p135 = scmp.eq.s32.totalorder %s23, 3
    %p136 = por %p134, %p135
    %p138 = scmp.ne.s32.totalorder %s121, %s137
    %p139 = scmp.eq.s32.totalorder %s23, 0
    %p140 = por %p138, %p139
    %s141 = ssub.s32 %s25, %s32
    %p142 = scmp.eq.s32.totalorder %s141, 0
    %s144 = sadd.s32 %s143, 1
    %s145 = scalar_select %p142, %s143, %s144
    %p148 = pneg %p142
    %p149 = scmp.eq.s32.totalorder %s17, 3
    %p150 = por %p148, %p149
    %p151 = scmp.ne.s32.totalorder %s143, %s146
    %p152 = scmp.eq.s32.totalorder %s17, 0
    %p153 = por %p151, %p152
    %p154 = scmp.ne.s32.totalorder %s143, %s146
    %p155 = scmp.eq.s32.totalorder %s22, 3
    %p156 = por %p154, %p155
    %p157 = scmp.ne.s32.totalorder %s146, %s147
    %p158 = scmp.eq.s32.totalorder %s22, 0
    %p159 = por %p157, %p158
    %p160 = scmp.ne.s32.totalorder %s146, %s147
    %p161 = scmp.eq.s32.totalorder %s23, 3
    %p162 = por %p160, %p161
    %p164 = scmp.ne.s32.totalorder %s147, %s163
    %p165 = scmp.eq.s32.totalorder %s23, 0
    %p166 = por %p164, %p165
    %s167 = ssub.s32 %s25, %s32
    %p168 = scmp.eq.s32.totalorder %s167, 0
    %s170 = sadd.s32 %s169, 1
    %s171 = scalar_select %p168, %s169, %s170
    %p174 = pneg %p168
    %p175 = scmp.eq.s32.totalorder %s17, 3
    %p176 = por %p174, %p175
    %p177 = scmp.ne.s32.totalorder %s169, %s172
    %p178 = scmp.eq.s32.totalorder %s17, 0
    %p179 = por %p177, %p178
    %p180 = scmp.ne.s32.totalorder %s169, %s172
    %p181 = scmp.eq.s32.totalorder %s22, 3
    %p182 = por %p180, %p181
    %p183 = scmp.ne.s32.totalorder %s172, %s173
    %p184 = scmp.eq.s32.totalorder %s22, 0
    %p185 = por %p183, %p184
    %p186 = scmp.ne.s32.totalorder %s172, %s173
    %p187 = scmp.eq.s32.totalorder %s23, 3
    %p188 = por %p186, %p187
    %p190 = scmp.ne.s32.totalorder %s173, %s189
    %p191 = scmp.eq.s32.totalorder %s23, 0
    %p192 = por %p190, %p191
    %s193 = ssub.s32 %s25, %s32
    %p194 = scmp.eq.s32.totalorder %s193, 0
    %s196 = sadd.s32 %s195, 1
    %s197 = scalar_select %p194, %s195, %s196
    %p200 = pneg %p194
    %p201 = scmp.eq.s32.totalorder %s17, 3
    %p202 = por %p200, %p201
    %p203 = scmp.ne.s32.totalorder %s195, %s198
    %p204 = scmp.eq.s32.totalorder %s17, 0
    %p205 = por %p203, %p204
    %p206 = scmp.ne.s32.totalorder %s195, %s198
    %p207 = scmp.eq.s32.totalorder %s22, 3
    %p208 = por %p206, %p207
    %p209 = scmp.ne.s32.totalorder %s198, %s199
    %p210 = scmp.eq.s32.totalorder %s22, 0
    %p211 = por %p209, %p210
    %p212 = scmp.ne.s32.totalorder %s198, %s199
    %p213 = scmp.eq.s32.totalorder %s23, 3
    %p214 = por %p212, %p213
    %p216 = scmp.ne.s32.totalorder %s199, %s215
    %p217 = scmp.eq.s32.totalorder %s23, 0
    %p218 = por %p216, %p217
    %s219 = ssub.s32 %s25, %s32
    %p220 = scmp.eq.s32.totalorder %s219, 0
    %s222 = sadd.s32 %s221, 1
    %s223 = scalar_select %p220, %s221, %s222
    %p226 = pneg %p220
    %p227 = scmp.eq.s32.totalorder %s17, 3
    %p228 = por %p226, %p227
    %p229 = scmp.ne.s32.totalorder %s221, %s224
    %p230 = scmp.eq.s32.totalorder %s17, 0
    %p231 = por %p229, %p230
    %p232 = scmp.ne.s32.totalorder %s221, %s224
    %p233 = scmp.eq.s32.totalorder %s22, 3
    %p234 = por %p232, %p233
    %p235 = scmp.ne.s32.totalorder %s224, %s225
    %p236 = scmp.eq.s32.totalorder %s22, 0
    %p237 = por %p235, %p236
    %p238 = scmp.ne.s32.totalorder %s224, %s225
    %p239 = scmp.eq.s32.totalorder %s23, 3
    %p240 = por %p238, %p239
    %p242 = scmp.ne.s32.totalorder %s225, %s241
    %p243 = scmp.eq.s32.totalorder %s23, 0
    %p244 = por %p242, %p243
    %s245 = ssub.s32 %s25, %s32
    %p246 = scmp.eq.s32.totalorder %s245, 0
    %s248 = sadd.s32 %s247, 1
    %s249 = scalar_select %p246, %s247, %s248
    %p252 = pneg %p246
    %p253 = scmp.eq.s32.totalorder %s17, 3
    %p254 = por %p252, %p253
    %p255 = scmp.ne.s32.totalorder %s247, %s250
    %p256 = scmp.eq.s32.totalorder %s17, 0
    %p257 = por %p255, %p256
    %p258 = scmp.ne.s32.totalorder %s247, %s250
    %p259 = scmp.eq.s32.totalorder %s22, 3
    %p260 = por %p258, %p259
    %p261 = scmp.ne.s32.totalorder %s250, %s251
    %p262 = scmp.eq.s32.totalorder %s22, 0
    %p263 = por %p261, %p262
    %p264 = scmp.ne.s32.totalorder %s250, %s251
    %p265 = scmp.eq.s32.totalorder %s23, 3
    %p266 = por %p264, %p265
    %p268 = scmp.ne.s32.totalorder %s251, %s267
    %p269 = scmp.eq.s32.totalorder %s23, 0
    %p270 = por %p268, %p269
    %s271 = ssub.s32 %s25, %s32
    %p272 = scmp.eq.s32.totalorder %s271, 0
    %s274 = sadd.s32 %s273, 1
    %s275 = scalar_select %p272, %s273, %s274
    %p278 = pneg %p272
    %p279 = scmp.eq.s32.totalorder %s17, 3
    %p280 = por %p278, %p279
    %p281 = scmp.ne.s32.totalorder %s273, %s276
    %p282 = scmp.eq.s32.totalorder %s17, 0
    %p283 = por %p281, %p282
    %p284 = scmp.ne.s32.totalorder %s273, %s276
    %p285 = scmp.eq.s32.totalorder %s22, 3
    %p286 = por %p284, %p285
    %p287 = scmp.ne.s32.totalorder %s276, %s277
    %p288 = scmp.eq.s32.totalorder %s22, 0
    %p289 = por %p287, %p288
    %p290 = scmp.ne.s32.totalorder %s276, %s277
    %p291 = scmp.eq.s32.totalorder %s23, 3
    %p292 = por %p290, %p291
    %p294 = scmp.ne.s32.totalorder %s277, %s293
    %p295 = scmp.eq.s32.totalorder %s23, 0
    %p296 = por %p294, %p295
    %s297 = ssub.s32 %s25, %s32
    %p298 = scmp.eq.s32.totalorder %s297, 0
    %s300 = sadd.s32 %s299, 1
    %s301 = scalar_select %p298, %s299, %s300
    %p304 = pneg %p298
    %p305 = scmp.eq.s32.totalorder %s17, 3
    %p306 = por %p304, %p305
    %p307 = scmp.ne.s32.totalorder %s299, %s302
    %p308 = scmp.eq.s32.totalorder %s17, 0
    %p309 = por %p307, %p308
    %p310 = scmp.ne.s32.totalorder %s299, %s302
    %p311 = scmp.eq.s32.totalorder %s22, 3
    %p312 = por %p310, %p311
    %p313 = scmp.ne.s32.totalorder %s302, %s303
    %p314 = scmp.eq.s32.totalorder %s22, 0
    %p315 = por %p313, %p314
    %p316 = scmp.ne.s32.totalorder %s302, %s303
    %p317 = scmp.eq.s32.totalorder %s23, 3
    %p318 = por %p316, %p317
    %p320 = scmp.ne.s32.totalorder %s303, %s319
    %p321 = scmp.eq.s32.totalorder %s23, 0
    %p322 = por %p320, %p321
    %s323 = ssub.s32 %s24, %s36
    %p324 = scmp.eq.s32.totalorder %s323, 0
    %s326 = sadd.s32 %s325, 1
    %s327 = scalar_select %p324, %s325, %s326
    %p330 = pneg %p324
    %p331 = scmp.eq.s32.totalorder %s17, 3
    %p332 = por %p330, %p331
    %p333 = scmp.ne.s32.totalorder %s325, %s328
    %p334 = scmp.eq.s32.totalorder %s17, 0
    %p335 = por %p333, %p334
    %p336 = scmp.ne.s32.totalorder %s325, %s328
    %p337 = scmp.eq.s32.totalorder %s22, 3
    %p338 = por %p336, %p337
    %p339 = scmp.ne.s32.totalorder %s328, %s329
    %p340 = scmp.eq.s32.totalorder %s22, 0
    %p341 = por %p339, %p340
    %p342 = scmp.ne.s32.totalorder %s328, %s329
    %p343 = scmp.eq.s32.totalorder %s23, 3
    %p344 = por %p342, %p343
    %p346 = scmp.ne.s32.totalorder %s329, %s345
    %p347 = scmp.eq.s32.totalorder %s23, 0
    %p348 = por %p346, %p347
    %p349 = scmp.le.s32.totalorder 1, %s17
    %p350 = scmp.lt.s32.totalorder %s17, 5
    %p351 = pnand %p349, %p350
    %p352 = pneg %p351
    // Predicated region
    $region9: #{mambabyte_lm_forward.3} parent=5 // pred_check
      _
    $region10: #{mambabyte_lm_forward.3} parent=5 // pred_check_branch
      %354 = sbr.rel (%p351) target = $region12
    $region11: #{mambabyte_lm_forward.3} parent=5 // pred_region
      %s355 = ssub.s32 %s17, 1
    $region12: #{mambabyte_lm_forward.3} parent=5 // pred_fallthru
      _
    %p356 = scmp.lt.s32.totalorder %s17, 4
    // Predicated region
    $region13: #{mambabyte_lm_forward.3} parent=5 // pred_check
      %p357 = pneg %p356
    $region14: #{mambabyte_lm_forward.3} parent=5 // pred_check_branch
      %359 = sbr.rel (%p357) target = $region16
    $region15: #{mambabyte_lm_forward.3} parent=5 // pred_region
      // Predicated region
      $region17: #{mambabyte_lm_forward.3} parent=15 // pred_check
        %p360 = pneg %p49
      $region18: #{mambabyte_lm_forward.3} parent=15 // pred_check_branch
        %362 = sbr.rel (%p360) target = $region20
      $region19: #{mambabyte_lm_forward.3} parent=15 // pred_region
        %p363 = scmp.lt.s32.totalorder %s24, 1
        %s364 = scalar_select %p363, %s24, 1
        %s365 = smul.addr %s364, 8
        %s366 = scalar_lea.vmem %s0, %s365
      $region20: #{mambabyte_lm_forward.3} parent=15 // pred_fallthru
        _
      // Predicated region
      $region21: #{mambabyte_lm_forward.3} parent=15 // pred_check
        %p367 = pneg %p75
      $region22: #{mambabyte_lm_forward.3} parent=15 // pred_check_branch
        %369 = sbr.rel (%p367) target = $region24
      $region23: #{mambabyte_lm_forward.3} parent=15 // pred_region
        %p370 = scmp.lt.s32.totalorder %s25, 1
        %s371 = scalar_select %p370, %s25, 1
        %s372 = scalar_lea.vmem %s1, %s371
      $region24: #{mambabyte_lm_forward.3} parent=15 // pred_fallthru
        _
      // Predicated region
      $region25: #{mambabyte_lm_forward.3} parent=15 // pred_check
        %p373 = pneg %p101
      $region26: #{mambabyte_lm_forward.3} parent=15 // pred_check_branch
        %375 = sbr.rel (%p373) target = $region28
      $region27: #{mambabyte_lm_forward.3} parent=15 // pred_region
        %p376 = scmp.lt.s32.totalorder %s25, 1
        %s377 = scalar_select %p376, %s25, 1
        %s378 = smul.addr %s377, 4
        %s379 = smul.addr %s378, 4
        %s380 = scalar_lea.vmem %s2, %s379
      $region28: #{mambabyte_lm_forward.3} parent=15 // pred_fallthru
        _
      // Predicated region
      $region29: #{mambabyte_lm_forward.3} parent=15 // pred_check
        %p381 = pneg %p127
      $region30: #{mambabyte_lm_forward.3} parent=15 // pred_check_branch
        %383 = sbr.rel (%p381) target = $region32
      $region31: #{mambabyte_lm_forward.3} parent=15 // pred_region
        %p384 = scmp.lt.s32.totalorder %s25, 1
        %s385 = scalar_select %p384, %s25, 1
        %s386 = smul.addr %s385, 4
        %s387 = scalar_lea.vmem %s3, %s386
      $region32: #{mambabyte_lm_forward.3} parent=15 // pred_fallthru
        _
      // Predicated region
      $region33: #{mambabyte_lm_forward.3} parent=15 // pred_check
        %p388 = pneg %p153
      $region34: #{mambabyte_lm_forward.3} parent=15 // pred_check_branch
        %390 = sbr.rel (%p388) target = $region36
      $region35: #{mambabyte_lm_forward.3} parent=15 // pred_region
        %p391 = scmp.lt.s32.totalorder %s25, 1
        %s392 = scalar_select %p391, %s25, 1
        %s393 = scalar_lea.vmem %s4, %s392
      $region36: #{mambabyte_lm_forward.3} parent=15 // pred_fallthru
        _
      // Predicated region
      $region37: #{mambabyte_lm_forward.3} parent=15 // pred_check
        %p394 = pneg %p179
      $region38: #{mambabyte_lm_forward.3} parent=15 // pred_check_branch
        %396 = sbr.rel (%p394) target = $region40
      $region39: #{mambabyte_lm_forward.3} parent=15 // pred_region
        %p397 = scmp.lt.s32.totalorder %s25, 1
        %s398 = scalar_select %p397, %s25, 1
        %s399 = smul.addr %s398, 8
        %s400 = smul.addr %s399, 4
        %s401 = scalar_lea.vmem %s5, %s400
      $region40: #{mambabyte_lm_forward.3} parent=15 // pred_fallthru
        _
      // Predicated region
      $region41: #{mambabyte_lm_forward.3} parent=15 // pred_check
        %p402 = pneg %p205
      $region42: #{mambabyte_lm_forward.3} parent=15 // pred_check_branch
        %404 = sbr.rel (%p402) target = $region44
      $region43: #{mambabyte_lm_forward.3} parent=15 // pred_region
        %p405 = scmp.lt.s32.totalorder %s25, 1
        %s406 = scalar_select %p405, %s25, 1
        %s407 = scalar_lea.vmem %s6, %s406
      $region44: #{mambabyte_lm_forward.3} parent=15 // pred_fallthru
        _
      // Predicated region
      $region45: #{mambabyte_lm_forward.3} parent=15 // pred_check
        %p408 = pneg %p231
      $region46: #{mambabyte_lm_forward.3} parent=15 // pred_check_branch
        %410 = sbr.rel (%p408) target = $region48
      $region47: #{mambabyte_lm_forward.3} parent=15 // pred_region
        %p411 = scmp.lt.s32.totalorder %s25, 1
        %s412 = scalar_select %p411, %s25, 1
        %s413 = scalar_lea.vmem %s7, %s412
      $region48: #{mambabyte_lm_forward.3} parent=15 // pred_fallthru
        _
      // Predicated region
      $region49: #{mambabyte_lm_forward.3} parent=15 // pred_check
        %p414 = pneg %p257
      $region50: #{mambabyte_lm_forward.3} parent=15 // pred_check_branch
        %416 = sbr.rel (%p414) target = $region52
      $region51: #{mambabyte_lm_forward.3} parent=15 // pred_region
        %p417 = scmp.lt.s32.totalorder %s25, 1
        %s418 = scalar_select %p417, %s25, 1
        %s419 = smul.addr %s418, 2
        %s420 = smul.addr %s419, 8
        %s421 = scalar_lea.vmem %s8, %s420
      $region52: #{mambabyte_lm_forward.3} parent=15 // pred_fallthru
        _
      // Predicated region
      $region53: #{mambabyte_lm_forward.3} parent=15 // pred_check
        %p422 = pneg %p283
      $region54: #{mambabyte_lm_forward.3} parent=15 // pred_check_branch
        %424 = sbr.rel (%p422) target = $region56
      $region55: #{mambabyte_lm_forward.3} parent=15 // pred_region
        %p425 = scmp.lt.s32.totalorder %s25, 1
        %s426 = scalar_select %p425, %s25, 1
        %s427 = scalar_lea.vmem %s9, %s426
      $region56: #{mambabyte_lm_forward.3} parent=15 // pred_fallthru
        _
      // Predicated region
      $region57: #{mambabyte_lm_forward.3} parent=15 // pred_check
        %p428 = pneg %p309
      $region58: #{mambabyte_lm_forward.3} parent=15 // pred_check_branch
        %430 = sbr.rel (%p428) target = $region60
      $region59: #{mambabyte_lm_forward.3} parent=15 // pred_region
        %p431 = scmp.lt.s32.totalorder %s25, 1
        %s432 = scalar_select %p431, %s25, 1
        %s433 = smul.addr %s432, 8
        %s434 = smul.addr %s433, 4
        %s435 = scalar_lea.vmem %s10, %s434
      $region60: #{mambabyte_lm_forward.3} parent=15 // pred_fallthru
        _
    $region16: #{mambabyte_lm_forward.3} parent=5 // pred_fallthru
      _
    %p436 = scmp.le.s32.totalorder 1, %s17
    %p437 = scmp.lt.s32.totalorder %s17, 5
    %p438 = pnand %p436, %p437
    %p439 = pneg %p438
    // Predicated region
    $region61: #{mambabyte_lm_forward.3} parent=5 // pred_check
      _
    $region62: #{mambabyte_lm_forward.3} parent=5 // pred_check_branch
      %441 = sbr.rel (%p438) target = $region64
    $region63: #{mambabyte_lm_forward.3} parent=5 // pred_region
      %s442 = ssub.s32 %s17, 1
      %p443 = scmp.lt.s32.totalorder %s26, 1
      %s444 = scalar_select %p443, %s26, 1
      %s445 = smul.addr %s444, 8
      %s446 = scalar_lea.vmem %s0, %s445
      %p447 = pneg %p55
      %p448 = pneg %p52
      %p449 = scmp.lt.s32.totalorder %s27, 1
      %s450 = scalar_select %p449, %s27, 1
      %s451 = scalar_lea.vmem %s1, %s450
      %p452 = pneg %p81
      %p453 = pneg %p78
      %p454 = scmp.lt.s32.totalorder %s27, 1
      %s455 = scalar_select %p454, %s27, 1
      %s456 = smul.addr %s455, 4
      %s457 = smul.addr %s456, 4
      %s458 = scalar_lea.vmem %s2, %s457
      %p459 = pneg %p107
      %p460 = pneg %p104
      %p461 = scmp.lt.s32.totalorder %s27, 1
      %s462 = scalar_select %p461, %s27, 1
      %s463 = smul.addr %s462, 4
      %s464 = scalar_lea.vmem %s3, %s463
      %p465 = pneg %p133
      %p466 = pneg %p130
      %p467 = scmp.lt.s32.totalorder %s27, 1
      %s468 = scalar_select %p467, %s27, 1
      %s469 = scalar_lea.vmem %s4, %s468
      %p470 = pneg %p159
      %p471 = pneg %p156
      %p472 = scmp.lt.s32.totalorder %s27, 1
      %s473 = scalar_select %p472, %s27, 1
      %s474 = smul.addr %s473, 8
      %s475 = smul.addr %s474, 4
      %s476 = scalar_lea.vmem %s5, %s475
      %p477 = pneg %p185
      %p478 = pneg %p182
      %p479 = scmp.lt.s32.totalorder %s27, 1
      %s480 = scalar_select %p479, %s27, 1
      %s481 = scalar_lea.vmem %s6, %s480
      %p482 = pneg %p211
      %p483 = pneg %p208
      %p484 = scmp.lt.s32.totalorder %s27, 1
      %s485 = scalar_select %p484, %s27, 1
      %s486 = scalar_lea.vmem %s7, %s485
      %p487 = pneg %p237
      %p488 = pneg %p234
      %p489 = scmp.lt.s32.totalorder %s27, 1
      %s490 = scalar_select %p489, %s27, 1
      %s491 = smul.addr %s490, 2
      %s492 = smul.addr %s491, 8
      %s493 = scalar_lea.vmem %s8, %s492
      %p494 = pneg %p263
      %p495 = pneg %p260
      %p496 = scmp.lt.s32.totalorder %s27, 1
      %s497 = scalar_select %p496, %s27, 1
      %s498 = scalar_lea.vmem %s9, %s497
      %p499 = pneg %p289
      %p500 = pneg %p286
      %p501 = scmp.lt.s32.totalorder %s27, 1
      %s502 = scalar_select %p501, %s27, 1
      %s503 = smul.addr %s502, 8
      %s504 = smul.addr %s503, 4
      %s505 = scalar_lea.vmem %s10, %s504
      %p506 = pneg %p315
      %p507 = pneg %p312
      %p508 = pneg %p341
      %p509 = pneg %p338
      %p510 = scmp.lt.s32.totalorder %s26, 1
      %s511 = scalar_select %p510, %s26, 1
      %s512 = smul.addr %s511, 4
      %s513 = scalar_lea.vmem %s11, %s512
      %p514 = scmp.lt.s32.totalorder %s26, 1
      %s515 = scalar_select %p514, %s26, 1
      %s516 = smul.addr %s515, 8
      %s517 = scalar_lea.vmem %s0, %s516
      %p518 = scmp.lt.s32.totalorder %s27, 1
      %s519 = scalar_select %p518, %s27, 1
      %s520 = scalar_lea.vmem %s1, %s519
      %p521 = scmp.lt.s32.totalorder %s27, 1
      %s522 = scalar_select %p521, %s27, 1
      %s523 = smul.addr %s522, 4
      %s524 = smul.addr %s523, 4
      %s525 = scalar_lea.vmem %s2, %s524
      %p526 = scmp.lt.s32.totalorder %s27, 1
      %s527 = scalar_select %p526, %s27, 1
      %s528 = smul.addr %s527, 4
      %s529 = scalar_lea.vmem %s3, %s528
      %p530 = scmp.lt.s32.totalorder %s27, 1
      %s531 = scalar_select %p530, %s27, 1
      %s532 = scalar_lea.vmem %s4, %s531
      %p533 = scmp.lt.s32.totalorder %s27, 1
      %s534 = scalar_select %p533, %s27, 1
      %s535 = smul.addr %s534, 8
      %s536 = smul.addr %s535, 4
      %s537 = scalar_lea.vmem %s5, %s536
      %p538 = scmp.lt.s32.totalorder %s27, 1
      %s539 = scalar_select %p538, %s27, 1
      %s540 = scalar_lea.vmem %s6, %s539
      %p541 = scmp.lt.s32.totalorder %s27, 1
      %s542 = scalar_select %p541, %s27, 1
      %s543 = scalar_lea.vmem %s7, %s542
      %p544 = scmp.lt.s32.totalorder %s27, 1
      %s545 = scalar_select %p544, %s27, 1
      %s546 = smul.addr %s545, 2
      %s547 = smul.addr %s546, 8
      %s548 = scalar_lea.vmem %s8, %s547
      %p549 = scmp.lt.s32.totalorder %s27, 1
      %s550 = scalar_select %p549, %s27, 1
      %s551 = scalar_lea.vmem %s9, %s550
      %p552 = scmp.lt.s32.totalorder %s27, 1
      %s553 = scalar_select %p552, %s27, 1
      %s554 = smul.addr %s553, 8
      %s555 = smul.addr %s554, 4
      %s556 = scalar_lea.vmem %s10, %s555
      %p557 = scmp.lt.s32.totalorder %s26, 1
      %s558 = scalar_select %p557, %s26, 1
      %s559 = smul.addr %s558, 4
      %s560 = scalar_lea.vmem %s11, %s559
      %p562 = scmp.eq.s32.totalorder %s27, 0
      // Predicated region
      $region65: #{mambabyte_lm_forward.3} parent=63 // pred_check
        %p563 = pneg %p562
      $region66: #{mambabyte_lm_forward.3} parent=63 // pred_check_branch
        %565 = sbr.rel (%p563) target = $region68
      $region67: #{mambabyte_lm_forward.3} parent=63 // pred_region
        %v566 = vld [vmem:[%s517] sm:$0xff]
        %vm567 = vcmask 261120
        %568 = vst.msk [vmem:[#allocation2] sm:$0xff] %vm567, %v566
      $region68: #{mambabyte_lm_forward.3} parent=63 // pred_fallthru
        _
      %v569 = vld [vmem:[#allocation2] sm:$0xff]
      %v570 = vmul.f32 %v569, %v569
      %vm571 = vcmask 261120
      %v572 = vsel %vm571, %v570, 0.0
      %573 = vadd.xlane.f32.xlu0 %v572
      %v574 = vpop.xlane.xlu0 %573
      %v575 = vrcp.pop 32.0
      %v576 = vmul.f32 32.0, %v575
      %v577 = vsub.f32 1.0, %v576
      %v578 = vmul.f32 %v575, %v577
      %v579 = vadd.f32 %v575, %v578
      %vm580 = vweird.f32 %v575
      %v581 = vsel %vm580, %v575, %v579
      %v582 = vmul.f32 %v574, %v581
      %v583 = vadd.f32 %v582, 1e-05
      %v584 = vrsqrt.pop %v583
      %v585 = vmul.f32 %v584, %v583
      %v586 = vmul.f32 %v585, %v584
      %v587 = vmul.f32 0.5, %v586
      %v588 = vsub.f32 1.5, %v587
      %v589 = vmul.f32 %v584, %v588
      %vm590 = vweird.f32 %v583
      %vm591 = vweird.f32 %v584
      %vm592 = vmor %vm590, %vm591
      %v593 = vsel %vm592, %v584, %v589
      %v594 = vmul.f32 %v569, %v593
      %v595 = vld [vmem:[%s520] sm:$0x1]
      %v597 = vperm.slane %v595, 0
      %v599 = vmul.f32 %v594, %v597
      %v600 = vpack.c.bf16 %v599, %v599
      %v601 = vld [vmem:[%s525] sm:$0xf]
      %v602 = vld [vmem:[%s525 + $0x4] sm:$0xf]
      %v603 = vld [vmem:[%s525 + $0x8] sm:$0xf]
      %v604 = vld [vmem:[%s525 + $0xc] sm:$0xf]
      %v609 = vunpack.c.l.b16 %v601
      %v610 = vunpack.c.l.b16 %v602
      %v611 = vunpack.c.l.b16 %v603
      %v612 = vunpack.c.l.b16 %v604
      %v613 = vpack.c.b16 %v610, %v609
      %v614 = vpack.c.b16 %v612, %v611
      %v618 = vsel %vm571, %v600, 0
      %620 = vmatpush.bf16.msra.mxu0 0
      %621 = vmatpush.bf16.msra.mxu0 0
      %622 = vmatpush.bf16.msra.mxu0 0
      %623 = vmatpush.bf16.msra.mxu0 0
      %624 = vmatpush.bf16.msra.mxu0 0
      %625 = vmatpush.bf16.msra.mxu0 0
      %626 = vmatpush.bf16.msra.mxu0 %v614
      %627 = vmatpush.bf16.msra.mxu0 %v613
      %628 = vmatmul.bf16.gmra.mxu0 %v618
      %v629 = vpop.f32.mrf.mxu0
      %v630 = vadd.f32 0.0, %v629
      %v631 = vpop.f32.mrf.mxu0
      %632 = vdwg.mxu0
      %v633 = vld [vmem:[%s529] sm:$0xf]
      %v634 = vlaneseq
      %v635 = vshrl.u32 %v634, 7
      %v636 = vperm.slane %v633, 3
      %v637 = vmul.f32 %v630, %v636
      %v638 = vrot.slane %v630, 5
      %vm639 = vcmp.ge.s32.totalorder %v635, 3
      %v640 = vsel %vm639, 1, 0
      %vm641 = vcmp.eq.s32.totalorder %v640, 1
      %v642 = vsel %vm641, %v638, 0.0
      %v643 = vperm.slane %v633, 0
      %v644 = vmul.f32 %v642, %v643
      %v645 = vadd.f32 %v637, %v644
      %v646 = vrot.slane %v630, 6
      %vm647 = vcmp.ge.s32.totalorder %v635, 2
      %v648 = vsel %vm647, 1, 0
      %vm649 = vcmp.eq.s32.totalorder %v648, 1
      %v650 = vsel %vm649, %v646, 0.0
      %v651 = vperm.slane %v633, 1
      %v652 = vmul.f32 %v650, %v651
      %v653 = vadd.f32 %v645, %v652
      %v654 = vrot.slane %v630, 7
      %vm655 = vcmp.ge.s32.totalorder %v635, 1
      %v656 = vsel %vm655, 1, 0
      %vm657 = vcmp.eq.s32.totalorder %v656, 1
      %v658 = vsel %vm657, %v654, 0.0
      %v659 = vperm.slane %v633, 2
      %v660 = vmul.f32 %v658, %v659
      %v661 = vadd.f32 %v653, %v660
      %v662 = vld [vmem:[%s532] sm:$0x1]
      %v664 = vperm.slane %v662, 0
      %v666 = vadd.f32 %v661, %v664
      %v667 = vsub.f32 0.0, %v666
      %v668 = vmul.f32 %v667, 1.442695
      %v669 = vpow.pop %v668
      %v670 = vadd.f32 %v669, 1.0
      %v671 = vrcp.pop %v670
      %v672 = vmul.f32 %v670, %v671
      %v673 = vsub.f32 1.0, %v672
      %v674 = vmul.f32 %v671, %v673
      %v675 = vadd.f32 %v671, %v674
      %vm676 = vweird.f32 %v670
      %vm677 = vweird.f32 %v671
      %vm678 = vmor %vm676, %vm677
      %v679 = vsel %vm678, %v671, %v675
      %v680 = vand.u32 2147483647, %v670
      %vm681 = vcmp.eq.f32.partialorder %v680, 8.507059e+37
      %v682 = vand.u32 %v670, 2147483648
      %v683 = vor.u32 1.1754944e-38, %v682
      %v684 = vsel %vm681, %v683, %v679
      %v685 = vmul.f32 1.0, %v684
      %v686 = vmul.f32 %v666, %v685
      %vm687 = vcmask 523264
      %688 = vst.msk [vmem:[#allocation3] sm:$0xff] %vm687, %v686
      %v689 = vpack.c.bf16 %v686, %v686
      %v690 = vld [vmem:[%s537] sm:$0xf]
      %v691 = vld [vmem:[%s537 + $0x4] sm:$0xf]
      %v692 = vld [vmem:[%s537 + $0x8] sm:$0xf]
      %v693 = vld [vmem:[%s537 + $0xc] sm:$0xf]
      %v694 = vld [vmem:[%s537 + $0x10] sm:$0xf]
      %v695 = vld [vmem:[%s537 + $0x14] sm:$0xf]
      %v696 = vld [vmem:[%s537 + $0x18] sm:$0xf]
      %v697 = vld [vmem:[%s537 + $0x1c] sm:$0xf]
      %v706 = vunpack.c.l.b16 %v690
      %v707 = vunpack.c.l.b16 %v691
      %v708 = vunpack.c.l.b16 %v692
      %v709 = vunpack.c.l.b16 %v693
      %v710 = vunpack.c.l.b16 %v694
      %v711 = vunpack.c.l.b16 %v695
      %v712 = vunpack.c.l.b16 %v696
      %v713 = vunpack.c.l.b16 %v697
      %v714 = vpack.c.b16 %v707, %v706
      %v715 = vpack.c.b16 %v709, %v708
      %v716 = vpack.c.b16 %v711, %v710
      %v717 = vpack.c.b16 %v713, %v712
      %v723 = vsel %vm687, %v689, 0
      %725 = vmatpush.bf16.msra.mxu0 0
      %726 = vmatpush.bf16.msra.mxu0 0
      %727 = vmatpush.bf16.msra.mxu0 0
      %728 = vmatpush.bf16.msra.mxu0 0
      %729 = vmatpush.bf16.msra.mxu0 %v717
      %730 = vmatpush.bf16.msra.mxu0 %v716
      %731 = vmatpush.bf16.msra.mxu0 %v715
      %732 = vmatpush.bf16.msra.mxu0 %v714
      %733 = vmatmul.bf16.gmra.mxu0 %v723
      %v734 = vpop.f32.mrf.mxu0
      %v735 = vadd.f32 0.0, %v734
      %v736 = vpop.f32.mrf.mxu0
      %737 = vdwg.mxu0
      %739 = vrot.lane.b32.xlu0 %v735, 126
      %v740 = vpop.permute.xlu0 %739
      %vm742 = vcmask 130048
      %743 = vst.msk [vmem:[#allocation5] sm:$0xff] %vm742, %v740
      %744 = vrot.lane.b32.xlu0 %v735, 110
      %v745 = vpop.permute.xlu0 %744
      %747 = vst.msk [vmem:[#allocation6] sm:$0xff] %vm742, %v745
      %v748 = vpack.c.bf16 %v735, %v735
      %v749 = vld [vmem:[%s540] sm:$0x1]
      %v750 = vld [vmem:[%s543] sm:$0x1]
      %v752 = vperm.slane %v750, 0
      %vm754 = vcmask 15360
      %v756 = vsel %vm754, %v748, 0
      %vm758 = vcmask 1040384
      %v760 = vsel %vm758, %v749, 0
      %762 = vmatpush.bf16.msra.mxu0 0
      %763 = vmatpush.bf16.msra.mxu0 0
      %764 = vmatpush.bf16.msra.mxu0 0
      %765 = vmatpush.bf16.msra.mxu0 0
      %766 = vmatpush.bf16.msra.mxu0 0
      %767 = vmatpush.bf16.msra.mxu0 0
      %768 = vmatpush.bf16.msra.mxu0 0
      %769 = vmatpush.bf16.msra.mxu0 %v760
      %770 = vmatmul.bf16.gmra.mxu0 %v756
      %v771 = vpop.f32.mrf.mxu0
      %v772 = vadd.f32 %v752, %v771
      %v773 = vpop.f32.mrf.mxu0
      %774 = vdwg.mxu0
      %vm775 = vcmp.gt.f32.partialorder %v772, 20.0
      %v776 = vmin.f32 %v772, 20.0
      %v777 = vmul.f32 %v776, 1.442695
      %v778 = vpow.pop %v777
      %v779 = vadd.f32 %v778, 1.0
      %v780 = vlog2.pop %v779
      %v781 = vmul.f32 %v780, 0.6931472
      %v782 = vsel %vm775, %v772, %v781
      %783 = vst.msk [vmem:[#allocation4] sm:$0xff] %vm687, %v782
      %v784 = vld [vmem:[%s548] sm:$0xff]
      %v785 = vld [vmem:[%s548 + $0x8] sm:$0xff]
      %v786 = vld [vmem:[#allocation4] sm:$0x1]
      %v787 = vperm.slane %v786, 0
      %v788 = vmul.f32 %v787, %v784
      %v789 = vmul.f32 %v787, %v785
      %v790 = vmul.f32 %v788, 1.442695
      %v791 = vpow.pop %v790
      %v792 = vmul.f32 %v789, 1.442695
      %v793 = vpow.pop %v792
      %794 = vst.msk [vmem:[#allocation8] sm:$0xff] %vm687, %v791
      %795 = vst.msk [vmem:[#allocation8 + $0x8] sm:$0xff] %vm687, %v793
      %v796 = vld [vmem:[#allocation4 + $0x1] sm:$0x1]
      %v797 = vperm.slane %v796, 0
      %v798 = vmul.f32 %v797, %v784
      %v799 = vmul.f32 %v797, %v785
      %v800 = vmul.f32 %v798, 1.442695
      %v801 = vpow.pop %v800
      %v802 = vmul.f32 %v799, 1.442695
      %v803 = vpow.pop %v802
      %s804 = scalar_lea.vmem [#allocation8], 16
      %805 = vst.msk [vmem:[%s804] sm:$0xff] %vm687, %v801
      %806 = vst.msk [vmem:[%s804 + $0x8] sm:$0xff] %vm687, %v803
      %v807 = vld [vmem:[#allocation4 + $0x2] sm:$0x1]
      %v808 = vperm.slane %v807, 0
      %v809 = vmul.f32 %v808, %v784
      %v810 = vmul.f32 %v808, %v785
      %v811 = vmul.f32 %v809, 1.442695
      %v812 = vpow.pop %v811
      %v813 = vmul.f32 %v810, 1.442695
      %v814 = vpow.pop %v813
      %s815 = scalar_lea.vmem [#allocation8], 32
      %816 = vst.msk [vmem:[%s815] sm:$0xff] %vm687, %v812
      %817 = vst.msk [vmem:[%s815 + $0x8] sm:$0xff] %vm687, %v814
      %v818 = vld [vmem:[#allocation4 + $0x3] sm:$0x1]
      %v819 = vperm.slane %v818, 0
      %v820 = vmul.f32 %v819, %v784
      %v821 = vmul.f32 %v819, %v785
      %v822 = vmul.f32 %v820, 1.442695
      %v823 = vpow.pop %v822
      %v824 = vmul.f32 %v821, 1.442695
      %v825 = vpow.pop %v824
      %s826 = scalar_lea.vmem [#allocation8], 48
      %827 = vst.msk [vmem:[%s826] sm:$0xff] %vm687, %v823
      %828 = vst.msk [vmem:[%s826 + $0x8] sm:$0xff] %vm687, %v825
      %v829 = vld [vmem:[#allocation4 + $0x4] sm:$0x1]
      %v830 = vperm.slane %v829, 0
      %v831 = vmul.f32 %v830, %v784
      %v832 = vmul.f32 %v830, %v785
      %v833 = vmul.f32 %v831, 1.442695
      %v834 = vpow.pop %v833
      %v835 = vmul.f32 %v832, 1.442695
      %v836 = vpow.pop %v835
      %s837 = scalar_lea.vmem [#allocation8], 64
      %838 = vst.msk [vmem:[%s837] sm:$0xff] %vm687, %v834
      %839 = vst.msk [vmem:[%s837 + $0x8] sm:$0xff] %vm687, %v836
      %v840 = vld [vmem:[#allocation4 + $0x5] sm:$0x1]
      %v841 = vperm.slane %v840, 0
      %v842 = vmul.f32 %v841, %v784
      %v843 = vmul.f32 %v841, %v785
      %v844 = vmul.f32 %v842, 1.442695
      %v845 = vpow.pop %v844
      %v846 = vmul.f32 %v843, 1.442695
      %v847 = vpow.pop %v846
      %s848 = scalar_lea.vmem [#allocation8], 80
      %849 = vst.msk [vmem:[%s848] sm:$0xff] %vm687, %v845
      %850 = vst.msk [vmem:[%s848 + $0x8] sm:$0xff] %vm687, %v847
      %v851 = vld [vmem:[#allocation4 + $0x6] sm:$0x1]
      %v852 = vperm.slane %v851, 0
      %v853 = vmul.f32 %v852, %v784
      %v854 = vmul.f32 %v852, %v785
      %v855 = vmul.f32 %v853, 1.442695
      %v856 = vpow.pop %v855
      %v857 = vmul.f32 %v854, 1.442695
      %v858 = vpow.pop %v857
      %s859 = scalar_lea.vmem [#allocation8], 96
      %860 = vst.msk [vmem:[%s859] sm:$0xff] %vm687, %v856
      %861 = vst.msk [vmem:[%s859 + $0x8] sm:$0xff] %vm687, %v858
      %v862 = vld [vmem:[#allocation4 + $0x7] sm:$0x1]
      %v863 = vperm.slane %v862, 0
      %v864 = vmul.f32 %v863, %v784
      %v865 = vmul.f32 %v863, %v785
      %v866 = vmul.f32 %v864, 1.442695
      %v867 = vpow.pop %v866
      %v868 = vmul.f32 %v865, 1.442695
      %v869 = vpow.pop %v868
      %s870 = scalar_lea.vmem [#allocation8], 112
      %871 = vst.msk [vmem:[%s870] sm:$0xff] %vm687, %v867
      %872 = vst.msk [vmem:[%s870 + $0x8] sm:$0xff] %vm687, %v869
      %v873 = vld [vmem:[#allocation5] sm:$0xff]
      %874 = vxpose.xlu0.b32.start [1/16] %v873, 128
      %875 = vxpose.xlu0.b32.cont [2/16] 0.0, 128
      %876 = vxpose.xlu0.b32.cont [3/16] 0.0, 128
      %877 = vxpose.xlu0.b32.cont [4/16] 0.0, 128
      %878 = vxpose.xlu0.b32.cont [5/16] 0.0, 128
      %879 = vxpose.xlu0.b32.cont [6/16] 0.0, 128
      %880 = vxpose.xlu0.b32.cont [7/16] 0.0, 128
      %881 = vxpose.xlu0.b32.cont [8/16] 0.0, 128
      %882 = vxpose.xlu0.b32.cont [9/16] 0.0, 128
      %883 = vxpose.xlu0.b32.cont [10/16] 0.0, 128
      %884 = vxpose.xlu0.b32.cont [11/16] 0.0, 128
      %885 = vxpose.xlu0.b32.cont [12/16] 0.0, 128
      %886 = vxpose.xlu0.b32.cont [13/16] 0.0, 128
      %887 = vxpose.xlu0.b32.cont [14/16] 0.0, 128
      %888 = vxpose.xlu0.b32.cont [15/16] 0.0, 128
      %889 = vxpose.xlu0.b32.end [16/16] 0.0, 128
      %v890 = vpop.trf.xlu0
      %v891 = vpop.trf.xlu0
      %v892 = vpop.trf.xlu0
      %v893 = vpop.trf.xlu0
      %v894 = vpop.trf.xlu0
      %v895 = vpop.trf.xlu0
      %v896 = vpop.trf.xlu0
      %v897 = vpop.trf.xlu0
      %v898 = vpop.trf.xlu0
      %v899 = vpop.trf.xlu0
      %v900 = vpop.trf.xlu0
      %v901 = vpop.trf.xlu0
      %v902 = vpop.trf.xlu0
      %v903 = vpop.trf.xlu0
      %v904 = vpop.trf.xlu0
      %v905 = vpop.trf.xlu0
      %v906 = vld [vmem:[#allocation6] sm:$0xff]
      %907 = vxpose.xlu0.b32.start [1/16] %v906, 128
      %908 = vxpose.xlu0.b32.cont [2/16] 0.0, 128
      %909 = vxpose.xlu0.b32.cont [3/16] 0.0, 128
      %910 = vxpose.xlu0.b32.cont [4/16] 0.0, 128
      %911 = vxpose.xlu0.b32.cont [5/16] 0.0, 128
      %912 = vxpose.xlu0.b32.cont [6/16] 0.0, 128
      %913 = vxpose.xlu0.b32.cont [7/16] 0.0, 128
      %914 = vxpose.xlu0.b32.cont [8/16] 0.0, 128
      %915 = vxpose.xlu0.b32.cont [9/16] 0.0, 128
      %916 = vxpose.xlu0.b32.cont [10/16] 0.0, 128
      %917 = vxpose.xlu0.b32.cont [11/16] 0.0, 128
      %918 = vxpose.xlu0.b32.cont [12/16] 0.0, 128
      %919 = vxpose.xlu0.b32.cont [13/16] 0.0, 128
      %920 = vxpose.xlu0.b32.cont [14/16] 0.0, 128
      %921 = vxpose.xlu0.b32.cont [15/16] 0.0, 128
      %922 = vxpose.xlu0.b32.end [16/16] 0.0, 128
      %v923 = vpop.trf.xlu0
      %v924 = vpop.trf.xlu0
      %v925 = vpop.trf.xlu0
      %v926 = vpop.trf.xlu0
      %v927 = vpop.trf.xlu0
      %v928 = vpop.trf.xlu0
      %v929 = vpop.trf.xlu0
      %v930 = vpop.trf.xlu0
      %v931 = vpop.trf.xlu0
      %v932 = vpop.trf.xlu0
      %v933 = vpop.trf.xlu0
      %v934 = vpop.trf.xlu0
      %v935 = vpop.trf.xlu0
      %v936 = vpop.trf.xlu0
      %v937 = vpop.trf.xlu0
      %v938 = vpop.trf.xlu0
      %v939 = vld [vmem:[#allocation4] sm:$0xff]
      %v940 = vld [vmem:[#allocation3] sm:$0xff]
      %v941 = vmul.f32 %v939, %v940
      %943 = vset.pattern.permute.xlu0 0
      %944 = vperm.xlu0 %943, %v890
      %v945 = vpop.permute.xlu0 %944
      %948 = vset.pattern.permute.xlu0 0
      %949 = vperm.xlu0 %948, %v891
      %v950 = vpop.permute.xlu0 %949
      %v952 = vperm.slane %v941, 0
      %v953 = vmul.f32 %v945, %v952
      %v954 = vmul.f32 %v950, %v952
      %s955 = smul.u32 0, 16
      %s956 = scalar_lea.vmem [#allocation8], %s955
      %v957 = vld [vmem:[%s956] sm:$0xff]
      %v958 = vld [vmem:[%s956 + $0x8] sm:$0xff]
      %v959 = vmul.f32 %v957, 0.0
      %v960 = vmul.f32 %v958, 0.0
      %v961 = vadd.f32 %v959, %v953
      %v962 = vadd.f32 %v960, %v954
      %964 = vset.pattern.permute.xlu0 0
      %965 = vperm.xlu0 %964, %v923
      %v966 = vpop.permute.xlu0 %965
      %969 = vset.pattern.permute.xlu0 0
      %970 = vperm.xlu0 %969, %v924
      %v971 = vpop.permute.xlu0 %970
      %v973 = vmul.f32 %v966, %v961
      %v974 = vmul.f32 %v971, %v962
      %v975 = vsel %vm687, %v973, 0.0
      %v976 = vsel %vm687, %v974, 0.0
      %v977 = vadd.f32 %v975, %v976
      %v978 = vrot.slane %v977, 4
      %v979 = vadd.f32 %v977, %v978
      %v980 = vrot.slane %v979, 2
      %v981 = vadd.f32 %v979, %v980
      %v982 = vrot.slane %v981, 1
      %v983 = vadd.f32 %v981, %v982
      %vm984 = vcmask 516096
      %985 = vst.msk [vmem:[#allocation7] sm:$0x1] %vm984, %v983
      %986 = vset.pattern.permute.xlu0 1
      %987 = vperm.xlu0 %986, %v890
      %v988 = vpop.permute.xlu0 %987
      %990 = vset.pattern.permute.xlu0 1
      %991 = vperm.xlu0 %990, %v891
      %v992 = vpop.permute.xlu0 %991
      %v994 = vperm.slane %v941, 1
      %v995 = vmul.f32 %v988, %v994
      %v996 = vmul.f32 %v992, %v994
      %s997 = sadd.s32 0, 1
      %s998 = smul.u32 %s997, 16
      %s999 = scalar_lea.vmem [#allocation8], %s998
      %v1000 = vld [vmem:[%s999] sm:$0xff]
      %v1001 = vld [vmem:[%s999 + $0x8] sm:$0xff]
      %v1002 = vmul.f32 %v1000, %v961
      %v1003 = vmul.f32 %v1001, %v962
      %v1004 = vadd.f32 %v1002, %v995
      %v1005 = vadd.f32 %v1003, %v996
      %1006 = vset.pattern.permute.xlu0 1
      %1007 = vperm.xlu0 %1006, %v923
      %v1008 = vpop.permute.xlu0 %1007
      %1010 = vset.pattern.permute.xlu0 1
      %1011 = vperm.xlu0 %1010, %v924
      %v1012 = vpop.permute.xlu0 %1011
      %v1014 = vmul.f32 %v1008, %v1004
      %v1015 = vmul.f32 %v1012, %v1005
      %v1016 = vsel %vm687, %v1014, 0.0
      %v1017 = vsel %vm687, %v1015, 0.0
      %v1018 = vadd.f32 %v1016, %v1017
      %v1019 = vrot.slane %v1018, 4
      %v1020 = vadd.f32 %v1018, %v1019
      %v1021 = vrot.slane %v1020, 2
      %v1022 = vadd.f32 %v1020, %v1021
      %v1023 = vrot.slane %v1022, 1
      %v1024 = vadd.f32 %v1022, %v1023
      %s1025 = scalar_lea.vmem [#allocation7], %s997
      %1026 = vst.msk [vmem:[%s1025] sm:$0x1] %vm984, %v1024
      %1027 = vset.pattern.permute.xlu0 2
      %1028 = vperm.xlu0 %1027, %v890
      %v1029 = vpop.permute.xlu0 %1028
      %1031 = vset.pattern.permute.xlu0 2
      %1032 = vperm.xlu0 %1031, %v891
      %v1033 = vpop.permute.xlu0 %1032
      %v1035 = vperm.slane %v941, 2
      %v1036 = vmul.f32 %v1029, %v1035
      %v1037 = vmul.f32 %v1033, %v1035
      %s1038 = sadd.s32 0, 2
      %s1039 = smul.u32 %s1038, 16
      %s1040 = scalar_lea.vmem [#allocation8], %s1039
      %v1041 = vld [vmem:[%s1040] sm:$0xff]
      %v1042 = vld [vmem:[%s1040 + $0x8] sm:$0xff]
      %v1043 = vmul.f32 %v1041, %v1004
      %v1044 = vmul.f32 %v1042, %v1005
      %v1045 = vadd.f32 %v1043, %v1036
      %v1046 = vadd.f32 %v1044, %v1037
      %1047 = vset.pattern.permute.xlu0 2
      %1048 = vperm.xlu0 %1047, %v923
      %v1049 = vpop.permute.xlu0 %1048
      %1051 = vset.pattern.permute.xlu0 2
      %1052 = vperm.xlu0 %1051, %v924
      %v1053 = vpop.permute.xlu0 %1052
      %v1055 = vmul.f32 %v1049, %v1045
      %v1056 = vmul.f32 %v1053, %v1046
      %v1057 = vsel %vm687, %v1055, 0.0
      %v1058 = vsel %vm687, %v1056, 0.0
      %v1059 = vadd.f32 %v1057, %v1058
      %v1060 = vrot.slane %v1059, 4
      %v1061 = vadd.f32 %v1059, %v1060
      %v1062 = vrot.slane %v1061, 2
      %v1063 = vadd.f32 %v1061, %v1062
      %v1064 = vrot.slane %v1063, 1
      %v1065 = vadd.f32 %v1063, %v1064
      %s1066 = scalar_lea.vmem [#allocation7], %s1038
      %1067 = vst.msk [vmem:[%s1066] sm:$0x1] %vm984, %v1065
      %1068 = vset.pattern.permute.xlu0 3
      %1069 = vperm.xlu0 %1068, %v890
      %v1070 = vpop.permute.xlu0 %1069
      %1072 = vset.pattern.permute.xlu0 3
      %1073 = vperm.xlu0 %1072, %v891
      %v1074 = vpop.permute.xlu0 %1073
      %v1076 = vperm.slane %v941, 3
      %v1077 = vmul.f32 %v1070, %v1076
      %v1078 = vmul.f32 %v1074, %v1076
      %s1079 = sadd.s32 0, 3
      %s1080 = smul.u32 %s1079, 16
      %s1081 = scalar_lea.vmem [#allocation8], %s1080
      %v1082 = vld [vmem:[%s1081] sm:$0xff]
      %v1083 = vld [vmem:[%s1081 + $0x8] sm:$0xff]
      %v1084 = vmul.f32 %v1082, %v1045
      %v1085 = vmul.f32 %v1083, %v1046
      %v1086 = vadd.f32 %v1084, %v1077
      %v1087 = vadd.f32 %v1085, %v1078
      %1088 = vset.pattern.permute.xlu0 3
      %1089 = vperm.xlu0 %1088, %v923
      %v1090 = vpop.permute.xlu0 %1089
      %1092 = vset.pattern.permute.xlu0 3
      %1093 = vperm.xlu0 %1092, %v924
      %v1094 = vpop.permute.xlu0 %1093
      %v1096 = vmul.f32 %v1090, %v1086
      %v1097 = vmul.f32 %v1094, %v1087
      %v1098 = vsel %vm687, %v1096, 0.0
      %v1099 = vsel %vm687, %v1097, 0.0
      %v1100 = vadd.f32 %v1098, %v1099
      %v1101 = vrot.slane %v1100, 4
      %v1102 = vadd.f32 %v1100, %v1101
      %v1103 = vrot.slane %v1102, 2
      %v1104 = vadd.f32 %v1102, %v1103
      %v1105 = vrot.slane %v1104, 1
      %v1106 = vadd.f32 %v1104, %v1105
      %s1107 = scalar_lea.vmem [#allocation7], %s1079
      %1108 = vst.msk [vmem:[%s1107] sm:$0x1] %vm984, %v1106
      %1109 = vset.pattern.permute.xlu0 4
      %1110 = vperm.xlu0 %1109, %v890
      %v1111 = vpop.permute.xlu0 %1110
      %1113 = vset.pattern.permute.xlu0 4
      %1114 = vperm.xlu0 %1113, %v891
      %v1115 = vpop.permute.xlu0 %1114
      %v1117 = vperm.slane %v941, 4
      %v1118 = vmul.f32 %v1111, %v1117
      %v1119 = vmul.f32 %v1115, %v1117
      %s1120 = sadd.s32 0, 4
      %s1121 = smul.u32 %s1120, 16
      %s1122 = scalar_lea.vmem [#allocation8], %s1121
      %v1123 = vld [vmem:[%s1122] sm:$0xff]
      %v1124 = vld [vmem:[%s1122 + $0x8] sm:$0xff]
      %v1125 = vmul.f32 %v1123, %v1086
      %v1126 = vmul.f32 %v1124, %v1087
      %v1127 = vadd.f32 %v1125, %v1118
      %v1128 = vadd.f32 %v1126, %v1119
      %1129 = vset.pattern.permute.xlu0 4
      %1130 = vperm.xlu0 %1129, %v923
      %v1131 = vpop.permute.xlu0 %1130
      %1133 = vset.pattern.permute.xlu0 4
      %1134 = vperm.xlu0 %1133, %v924
      %v1135 = vpop.permute.xlu0 %1134
      %v1137 = vmul.f32 %v1131, %v1127
      %v1138 = vmul.f32 %v1135, %v1128
      %v1139 = vsel %vm687, %v1137, 0.0
      %v1140 = vsel %vm687, %v1138, 0.0
      %v1141 = vadd.f32 %v1139, %v1140
      %v1142 = vrot.slane %v1141, 4
      %v1143 = vadd.f32 %v1141, %v1142
      %v1144 = vrot.slane %v1143, 2
      %v1145 = vadd.f32 %v1143, %v1144
      %v1146 = vrot.slane %v1145, 1
      %v1147 = vadd.f32 %v1145, %v1146
      %s1148 = scalar_lea.vmem [#allocation7], %s1120
      %1149 = vst.msk [vmem:[%s1148] sm:$0x1] %vm984, %v1147
      %1150 = vset.pattern.permute.xlu0 5
      %1151 = vperm.xlu0 %1150, %v890
      %v1152 = vpop.permute.xlu0 %1151
      %1154 = vset.pattern.permute.xlu0 5
      %1155 = vperm.xlu0 %1154, %v891
      %v1156 = vpop.permute.xlu0 %1155
      %v1158 = vperm.slane %v941, 5
      %v1159 = vmul.f32 %v1152, %v1158
      %v1160 = vmul.f32 %v1156, %v1158
      %s1161 = sadd.s32 0, 5
      %s1162 = smul.u32 %s1161, 16
      %s1163 = scalar_lea.vmem [#allocation8], %s1162
      %v1164 = vld [vmem:[%s1163] sm:$0xff]
      %v1165 = vld [vmem:[%s1163 + $0x8] sm:$0xff]
      %v1166 = vmul.f32 %v1164, %v1127
      %v1167 = vmul.f32 %v1165, %v1128
      %v1168 = vadd.f32 %v1166, %v1159
      %v1169 = vadd.f32 %v1167, %v1160
      %1170 = vset.pattern.permute.xlu0 5
      %1171 = vperm.xlu0 %1170, %v923
      %v1172 = vpop.permute.xlu0 %1171
      %1174 = vset.pattern.permute.xlu0 5
      %1175 = vperm.xlu0 %1174, %v924
      %v1176 = vpop.permute.xlu0 %1175
      %v1178 = vmul.f32 %v1172, %v1168
      %v1179 = vmul.f32 %v1176, %v1169
      %v1180 = vsel %vm687, %v1178, 0.0
      %v1181 = vsel %vm687, %v1179, 0.0
      %v1182 = vadd.f32 %v1180, %v1181
      %v1183 = vrot.slane %v1182, 4
      %v1184 = vadd.f32 %v1182, %v1183
      %v1185 = vrot.slane %v1184, 2
      %v1186 = vadd.f32 %v1184, %v1185
      %v1187 = vrot.slane %v1186, 1
      %v1188 = vadd.f32 %v1186, %v1187
      %s1189 = scalar_lea.vmem [#allocation7], %s1161
      %1190 = vst.msk [vmem:[%s1189] sm:$0x1] %vm984, %v1188
      %1191 = vset.pattern.permute.xlu0 6
      %1192 = vperm.xlu0 %1191, %v890
      %v1193 = vpop.permute.xlu0 %1192
      %1195 = vset.pattern.permute.xlu0 6
      %1196 = vperm.xlu0 %1195, %v891
      %v1197 = vpop.permute.xlu0 %1196
      %v1199 = vperm.slane %v941, 6
      %v1200 = vmul.f32 %v1193, %v1199
      %v1201 = vmul.f32 %v1197, %v1199
      %s1202 = sadd.s32 0, 6
      %s1203 = smul.u32 %s1202, 16
      %s1204 = scalar_lea.vmem [#allocation8], %s1203
      %v1205 = vld [vmem:[%s1204] sm:$0xff]
      %v1206 = vld [vmem:[%s1204 + $0x8] sm:$0xff]
      %v1207 = vmul.f32 %v1205, %v1168
      %v1208 = vmul.f32 %v1206, %v1169
      %v1209 = vadd.f32 %v1207, %v1200
      %v1210 = vadd.f32 %v1208, %v1201
      %1211 = vset.pattern.permute.xlu0 6
      %1212 = vperm.xlu0 %1211, %v923
      %v1213 = vpop.permute.xlu0 %1212
      %1215 = vset.pattern.permute.xlu0 6
      %1216 = vperm.xlu0 %1215, %v924
      %v1217 = vpop.permute.xlu0 %1216
      %v1219 = vmul.f32 %v1213, %v1209
      %v1220 = vmul.f32 %v1217, %v1210
      %v1221 = vsel %vm687, %v1219, 0.0
      %v1222 = vsel %vm687, %v1220, 0.0
      %v1223 = vadd.f32 %v1221, %v1222
      %v1224 = vrot.slane %v1223, 4
      %v1225 = vadd.f32 %v1223, %v1224
      %v1226 = vrot.slane %v1225, 2
      %v1227 = vadd.f32 %v1225, %v1226
      %v1228 = vrot.slane %v1227, 1
      %v1229 = vadd.f32 %v1227, %v1228
      %s1230 = scalar_lea.vmem [#allocation7], %s1202
      %1231 = vst.msk [vmem:[%s1230] sm:$0x1] %vm984, %v1229
      %1232 = vset.pattern.permute.xlu0 7
      %1233 = vperm.xlu0 %1232, %v890
      %v1234 = vpop.permute.xlu0 %1233
      %1236 = vset.pattern.permute.xlu0 7
      %1237 = vperm.xlu0 %1236, %v891
      %v1238 = vpop.permute.xlu0 %1237
      %v1240 = vperm.slane %v941, 7
      %v1241 = vmul.f32 %v1234, %v1240
      %v1242 = vmul.f32 %v1238, %v1240
      %s1243 = sadd.s32 0, 7
      %s1244 = smul.u32 %s1243, 16
      %s1245 = scalar_lea.vmem [#allocation8], %s1244
      %v1246 = vld [vmem:[%s1245] sm:$0xff]
      %v1247 = vld [vmem:[%s1245 + $0x8] sm:$0xff]
      %v1248 = vmul.f32 %v1246, %v1209
      %v1249 = vmul.f32 %v1247, %v1210
      %v1250 = vadd.f32 %v1248, %v1241
      %v1251 = vadd.f32 %v1249, %v1242
      %1252 = vset.pattern.permute.xlu0 7
      %1253 = vperm.xlu0 %1252, %v923
      %v1254 = vpop.permute.xlu0 %1253
      %1256 = vset.pattern.permute.xlu0 7
      %1257 = vperm.xlu0 %1256, %v924
      %v1258 = vpop.permute.xlu0 %1257
      %v1260 = vmul.f32 %v1254, %v1250
      %v1261 = vmul.f32 %v1258, %v1251
      %v1262 = vsel %vm687, %v1260, 0.0
      %v1263 = vsel %vm687, %v1261, 0.0
      %v1264 = vadd.f32 %v1262, %v1263
      %v1265 = vrot.slane %v1264, 4
      %v1266 = vadd.f32 %v1264, %v1265
      %v1267 = vrot.slane %v1266, 2
      %v1268 = vadd.f32 %v1266, %v1267
      %v1269 = vrot.slane %v1268, 1
      %v1270 = vadd.f32 %v1268, %v1269
      %s1271 = scalar_lea.vmem [#allocation7], %s1243
      %1272 = vst.msk [vmem:[%s1271] sm:$0x1] %vm984, %v1270
      %v1273 = vld [vmem:[#allocation7] sm:$0xff]
      %v1274 = vld [vmem:[%s551] sm:$0x1]
      %v1276 = vperm.slane %v1274, 0
      %v1278 = vmul.f32 %v1276, %v686
      %v1279 = vadd.f32 %v1273, %v1278
      %v1280 = vsub.f32 0.0, %v630
      %v1281 = vmul.f32 %v1280, 1.442695
      %v1282 = vpow.pop %v1281
      %v1283 = vadd.f32 %v1282, 1.0
      %v1284 = vrcp.pop %v1283
      %v1285 = vmul.f32 %v1283, %v1284
      %v1286 = vsub.f32 1.0, %v1285
      %v1287 = vmul.f32 %v1284, %v1286
      %v1288 = vadd.f32 %v1284, %v1287
      %vm1289 = vweird.f32 %v1283
      %vm1290 = vweird.f32 %v1284
      %vm1291 = vmor %vm1289, %vm1290
      %v1292 = vsel %vm1291, %v1284, %v1288
      %v1293 = vand.u32 2147483647, %v1283
      %vm1294 = vcmp.eq.f32.partialorder %v1293, 8.507059e+37
      %v1295 = vand.u32 %v1283, 2147483648
      %v1296 = vor.u32 1.1754944e-38, %v1295
      %v1297 = vsel %vm1294, %v1296, %v1292
      %v1298 = vmul.f32 1.0, %v1297
      %v1299 = vmul.f32 %v630, %v1298
      %1301 = vrot.lane.b32.xlu0 %v1299, 64
      %v1302 = vpop.permute.xlu0 %1301
      %v1304 = vmul.f32 %v1279, %v1302
      %v1305 = vpack.c.bf16 %v1304, %v1304
      %v1306 = vld [vmem:[%s556] sm:$0xf]
      %v1307 = vld [vmem:[%s556 + $0x4] sm:$0xf]
      %v1308 = vld [vmem:[%s556 + $0x8] sm:$0xf]
      %v1309 = vld [vmem:[%s556 + $0xc] sm:$0xf]
      %v1310 = vld [vmem:[%s556 + $0x10] sm:$0xf]
      %v1311 = vld [vmem:[%s556 + $0x14] sm:$0xf]
      %v1312 = vld [vmem:[%s556 + $0x18] sm:$0xf]
      %v1313 = vld [vmem:[%s556 + $0x1c] sm:$0xf]
      %v1322 = vunpack.c.l.b16 %v1306
      %v1323 = vunpack.c.l.b16 %v1307
      %v1324 = vunpack.c.l.b16 %v1308
      %v1325 = vunpack.c.l.b16 %v1309
      %v1326 = vunpack.c.l.b16 %v1310
      %v1327 = vunpack.c.l.b16 %v1311
      %v1328 = vunpack.c.l.b16 %v1312
      %v1329 = vunpack.c.l.b16 %v1313
      %v1330 = vpack.c.b16 %v1323, %v1322
      %v1331 = vpack.c.b16 %v1325, %v1324
      %v1332 = vpack.c.b16 %v1327, %v1326
      %v1333 = vpack.c.b16 %v1329, %v1328
      %v1339 = vsel %vm687, %v1305, 0
      %1341 = vmatpush.bf16.msra.mxu0 0
      %1342 = vmatpush.bf16.msra.mxu0 0
      %1343 = vmatpush.bf16.msra.mxu0 0
      %1344 = vmatpush.bf16.msra.mxu0 0
      %1345 = vmatpush.bf16.msra.mxu0 %v1333
      %1346 = vmatpush.bf16.msra.mxu0 %v1332
      %1347 = vmatpush.bf16.msra.mxu0 %v1331
      %1348 = vmatpush.bf16.msra.mxu0 %v1330
      %1349 = vmatmul.bf16.gmra.mxu0 %v1339
      %v1350 = vpop.f32.mrf.mxu0
      %v1351 = vadd.f32 0.0, %v1350
      %v1352 = vpop.f32.mrf.mxu0
      %1353 = vdwg.mxu0
      %v1354 = vadd.f32 %v569, %v1351
      %1355 = vst.msk [vmem:[#allocation2] sm:$0xff] %vm571, %v1354
      %p1356 = scmp.eq.s32.totalorder %s27, 1
      // Predicated region
      $region69: #{mambabyte_lm_forward.3} parent=63 // pred_check
        %p1357 = pneg %p1356
      $region70: #{mambabyte_lm_forward.3} parent=63 // pred_check_branch
        %1359 = sbr.rel (%p1357) target = $region72
      $region71: #{mambabyte_lm_forward.3} parent=63 // pred_region
        %v1360 = vld [vmem:[#allocation2] sm:$0xff]
        %v1361 = vpack.c.bf16 %v1360, %v1360
        %vm1362 = vcmask 257024
        %1363 = vst.msk [vmem:[%s560] sm:$0xf] %vm1362, %v1361
      $region72: #{mambabyte_lm_forward.3} parent=63 // pred_fallthru
        _
      %p1364 = scmp.lt.s32.totalorder %s26, 1
      %s1365 = scalar_select %p1364, %s26, 1
      %s1366 = smul.addr %s1365, 4
      %s1367 = scalar_lea.vmem %s11, %s1366
      // Predicated region
      $region73: #{mambabyte_lm_forward.3} parent=63 // pred_check
        %p1368 = pneg %p338
      $region74: #{mambabyte_lm_forward.3} parent=63 // pred_check_branch
        %1370 = sbr.rel (%p1368) target = $region76
      $region75: #{mambabyte_lm_forward.3} parent=63 // pred_region
        _
      $region76: #{mambabyte_lm_forward.3} parent=63 // pred_fallthru
        _
    $region64: #{mambabyte_lm_forward.3} parent=5 // pred_fallthru
      _
    %p1371 = scmp.le.s32.totalorder 2, %s17
    // Predicated region
    $region77: #{mambabyte_lm_forward.3} parent=5 // pred_check
      %p1372 = pneg %p1371
    $region78: #{mambabyte_lm_forward.3} parent=5 // pred_check_branch
      %1374 = sbr.rel (%p1372) target = $region80
    $region79: #{mambabyte_lm_forward.3} parent=5 // pred_region
      %s1375 = ssub.s32 %s17, 2
      // Predicated region
      $region81: #{mambabyte_lm_forward.3} parent=79 // pred_check
        %p1376 = pneg %p344
      $region82: #{mambabyte_lm_forward.3} parent=79 // pred_check_branch
        %1378 = sbr.rel (%p1376) target = $region84
      $region83: #{mambabyte_lm_forward.3} parent=79 // pred_region
        %p1379 = scmp.lt.s32.totalorder %s28, 1
        %s1380 = scalar_select %p1379, %s28, 1
        %s1381 = smul.addr %s1380, 4
        %s1382 = scalar_lea.vmem %s11, %s1381
      $region84: #{mambabyte_lm_forward.3} parent=79 // pred_fallthru
        _
    $region80: #{mambabyte_lm_forward.3} parent=5 // pred_fallthru
      _
  $region6: #{mambabyte_lm_forward.3} parent=0 // loop_footer
    %s21 = sadd.s32 1, %s17
  $region7: #{mambabyte_lm_forward.3} parent=0 // loop_footer_branch
    %16 = sbr.rel target = $region3
  $region8: #{mambabyte_lm_forward.3} parent=0 // loop_exit
    _

</llo_original>
